<compile_context>
chip_gen: v7x
topology: tpu7x:2x2x1
jax: 0.10.0
libtpu: 0.0.40
codegen_flags: <defaults>
</compile_context>

<pallas_src>
import functools

import numpy as np
import jax
import jax.numpy as jnp
from jax.experimental import pallas as pl
from jax.experimental.pallas import tpu as pltpu

NEG_SLOPE = 0.05


def _lrelu(v):
    return jnp.where(v >= 0, v, NEG_SLOPE * v)


# ------------------------------- fused kernel --------------------------------

def _spectral_kernel(w1_ref, wh_ref, wv_ref,             # SMEM: (C1,Cin),(C1,C1),(C1,C1)
                     w2r_ref,                            # VMEM: (C1, Cout*W) lane rows
                     x_ref,                              # VMEM: (bb, Cin, H, W)
                     fw_ref, iw_ref, fh_ref, ih_ref,     # VMEM bf16 merged DFT bases
                     o_ref,                              # VMEM: (bb, H, Cout*W)
                     *, bb, cin, c1, ch, cout, h, w, kw, kh):
    f32, bf16 = jnp.float32, jnp.bfloat16
    w2r = w2r_ref[...]                                   # (C1, Cout*W) f32

    # ---- conv1 (1x1 weight-norm) + LeakyReLU(0.05), per-channel (H, W) slabs ----
    y = []
    for b in range(bb):
        yb = []
        for o in range(c1):
            acc = w1_ref[o, 0] * x_ref[b, 0]
            for c in range(1, cin):
                acc = acc + w1_ref[o, c] * x_ref[b, c]
            yb.append(_lrelu(acc))
        y.append(yb)

    # lane-dense conv2 accumulators: one (H, Cout*W) slab per image
    out_acc = [jnp.zeros((h, cout * w), f32) for _ in range(bb)]

    def conv2_add(b, c, z):
        # out[h, o*W + t] += w2[o, c] * z[h, t]   (dense full-lane VPU MAC)
        zt = jnp.concatenate([z] * cout, axis=1)          # (H, Cout*W)
        out_acc[b] = out_acc[b] + w2r[c:c + 1, :] * zt

    # ============ horizontal branch: rfft -> 1x1 mix -> lrelu -> irfft (along W) ============
    # channels (and the batch block) stacked into matmul M; one MXU pass per DFT stage.
    yh_s = jnp.concatenate([y[b][c] for b in range(bb) for c in range(ch)], axis=0)
    f_all = jnp.dot(yh_s.astype(bf16), fw_ref[...],
                    preferred_element_type=f32)           # (bb*ch*H, 2Kw) = [Re | Im]

    hr_list, hi_list = [], []
    for b in range(bb):
        base = b * ch
        re = [f_all[(base + c) * h:(base + c + 1) * h, :kw] for c in range(ch)]
        im = [f_all[(base + c) * h:(base + c + 1) * h, kw:] for c in range(ch)]
        # TODO(synk): at production channel counts replace these exact-f32 scalar-weight
        # VPU MACs (and the Kw-offset lane slices) with an MXU matmul over a packed
        # layout with channels on the contraction axis.
        for j in range(ch):
            accr = wh_ref[j, 0] * re[0]                   # real' = mix channel j
            acci = wh_ref[ch + j, 0] * re[0]              # imag' = mix channel ch+j
            for c in range(1, ch):
                accr = accr + wh_ref[j, c] * re[c]
                acci = acci + wh_ref[ch + j, c] * re[c]
            for c in range(ch):
                accr = accr + wh_ref[j, ch + c] * im[c]
                acci = acci + wh_ref[ch + j, ch + c] * im[c]
            hr_list.append(accr)
            hi_list.append(acci)
    a_pack = _lrelu(jnp.concatenate(
        [jnp.concatenate(hr_list, axis=0), jnp.concatenate(hi_list, axis=0)],
        axis=1))                                          # (bb*ch*H, 2Kw) = [Re' | Im']
    hor_s = jnp.dot(a_pack.astype(bf16), iw_ref[...],
                    preferred_element_type=f32)           # (bb*ch*H, W)

    # residual + conv2 contribution of the horizontal half (frees y[:ch]/hor early)
    for b in range(bb):
        for c in range(ch):
            r0 = (b * ch + c) * h
            conv2_add(b, c, y[b][c] + hor_s[r0:r0 + h, :])

    # ============ vertical branch: rfft -> 1x1 mix -> lrelu -> irfft (along H) =============
    # channels (and the batch block) stacked on lanes; DFTs are LEFT multiplications
    # by pre-transposed bases -> no data transposes anywhere.
    yv_l = jnp.concatenate([y[b][ch + c] for b in range(bb) for c in range(ch)], axis=1)
    g_all = jnp.dot(fh_ref[...], yv_l.astype(bf16),
                    preferred_element_type=f32)           # (2Kh, bb*ch*W): rows [Re ; Im]

    vr_list, vi_list = [], []
    for b in range(bb):
        base = b * ch
        re = [g_all[:kh, (base + c) * w:(base + c + 1) * w] for c in range(ch)]
        im = [g_all[kh:, (base + c) * w:(base + c + 1) * w] for c in range(ch)]
        for j in range(ch):
            accr = wv_ref[j, 0] * re[0]
            acci = wv_ref[ch + j, 0] * re[0]
            for c in range(1, ch):
                accr = accr + wv_ref[j, c] * re[c]
                acci = acci + wv_ref[ch + j, c] * re[c]
            for c in range(ch):
                accr = accr + wv_ref[j, ch + c] * im[c]
                acci = acci + wv_ref[ch + j, ch + c] * im[c]
            vr_list.append(accr)
            vi_list.append(acci)
    b_pack = _lrelu(jnp.concatenate(
        [jnp.concatenate(vr_list, axis=1), jnp.concatenate(vi_list, axis=1)],
        axis=0))                                          # (2Kh, bb*ch*W) = [Re' ; Im']
    vert_l = jnp.dot(ih_ref[...], b_pack.astype(bf16),
                     preferred_element_type=f32)          # (H, bb*ch*W)

    for b in range(bb):
        for c in range(ch):
            col = (b * ch + c) * w
            conv2_add(b, ch + c, y[b][ch + c] + vert_l[:, col:col + w])

    # ---- lane-dense store: one (H, Cout*W) slab per image, unmasked vst ----
    for b in range(bb):
        o_ref[b] = out_acc[b]


# --------------------------- merged DFT bases ---------------------------------

def _dft_bases_last(n):
    """Merged ortho rfft/irfft bases along the LAST axis (right multiplication):
       rows @ fwd          == [Re | Im] of rfft(rows, norm='ortho')
       [Re' | Im'] @ inv   == irfft(Re' + 1j*Im', n, norm='ortho')."""
    kk = n // 2 + 1
    t = np.arange(n)
    k = np.arange(kk)
    ang = 2.0 * np.pi * np.outer(t, k) / n                                   # (n, K)
    fwd = np.concatenate([np.cos(ang), -np.sin(ang)], axis=1) / np.sqrt(n)   # (n, 2K)
    wgt = np.full((kk, 1), 2.0)
    wgt[0, 0] = 1.0
    if n % 2 == 0:
        wgt[-1, 0] = 1.0
    angi = 2.0 * np.pi * np.outer(k, t) / n                                  # (K, n)
    inv = np.concatenate([wgt * np.cos(angi), -(wgt * np.sin(angi))],
                         axis=0) / np.sqrt(n)                                # (2K, n)
    return jnp.asarray(fwd, jnp.bfloat16), jnp.asarray(inv, jnp.bfloat16)


def _dft_bases_second(n):
    """Merged ortho rfft/irfft bases along the SECOND-TO-LAST axis via LEFT mult:
       fwd @ cols          == [Re ; Im]
       inv @ [Re' ; Im']   == irfft columns (norm='ortho')."""
    kk = n // 2 + 1
    t = np.arange(n)
    k = np.arange(kk)
    ang = 2.0 * np.pi * np.outer(k, t) / n                                   # (K, n)
    fwd = np.concatenate([np.cos(ang), -np.sin(ang)], axis=0) / np.sqrt(n)   # (2K, n)
    wgt = np.full((1, kk), 2.0)
    wgt[0, 0] = 1.0
    if n % 2 == 0:
        wgt[0, -1] = 1.0
    angi = 2.0 * np.pi * np.outer(t, k) / n                                  # (n, K)
    inv = np.concatenate([wgt * np.cos(angi), -(wgt * np.sin(angi))],
                         axis=1) / np.sqrt(n)                                # (n, 2K)
    return jnp.asarray(fwd, jnp.bfloat16), jnp.asarray(inv, jnp.bfloat16)


# ------------------------------- wrapper --------------------------------------

def spectral_transform_forward(x, params, *, batch_block=1):
    """x: (B, Cin, H, W) float32 NCHW. Returns (B, Cout, H, W) float32 NCHW."""
    B, Cin, H, W = x.shape
    w1, wh, wv, w2 = params["w1"], params["wh"], params["wv"], params["w2"]
    C1 = w1.shape[0]            # out_channels // 2
    Cout = w2.shape[0]
    assert C1 % 2 == 0 and wh.shape == (C1, C1) and wv.shape == (C1, C1)
    Ch = C1 // 2
    bb = batch_block
    assert B % bb == 0
    Kw = W // 2 + 1
    Kh = H // 2 + 1

    # merged DFT bases (bf16 -> single MXU pass per stage; f32 accumulation in-kernel)
    fw, iw = _dft_bases_last(W)       # (W, 2Kw), (2Kw, W)
    fh, ih = _dft_bases_second(H)     # (2Kh, H), (H, 2Kh)

    # conv2 weights as per-input-channel lane rows: w2r[c, o*W + t] = w2[o, c]
    w2r = jnp.repeat(w2.T, W, axis=1).astype(jnp.float32)        # (C1, Cout*W)

    kernel = functools.partial(_spectral_kernel, bb=bb, cin=Cin, c1=C1, ch=Ch,
                               cout=Cout, h=H, w=W, kw=Kw, kh=Kh)

    smem = pl.BlockSpec(memory_space=pltpu.MemorySpace.SMEM)

    def full(shape):
        return pl.BlockSpec(shape, lambda i, _s=shape: tuple(0 for _ in _s))

    # advisory cost for XLA's scheduler around the custom call
    flops_img = (2 * Cin * C1 * H * W
                 + 2 * (Ch * H) * W * (2 * Kw) + 2 * C1 * (2 * Ch) * H * Kw
                 + 2 * (Ch * H) * (2 * Kw) * W
                 + 2 * (2 * Kh) * H * (Ch * W) + 2 * C1 * (2 * Ch) * Kh * W
                 + 2 * H * (2 * Kh) * (Ch * W)
                 + 2 * C1 * Cout * H * W)
    bases_bytes = (W * 2 * Kw + 2 * Kw * W + 2 * Kh * H + H * 2 * Kh) * 2
    bytes_accessed = ((B * Cin * H * W + B * Cout * H * W) * 4 + bases_bytes
                      + (C1 * Cin + 2 * C1 * C1 + C1 * Cout * W) * 4)

    # VMEM: double-buffered x/out blocks + resident bases/weights, with headroom.
    blk_bytes = ((bb * Cin * H * W + bb * H * Cout * W) * 4
                 + bases_bytes + C1 * Cout * W * 4)
    vmem_limit = int(min(64 * 1024 * 1024, max(4 * 1024 * 1024, 8 * blk_bytes)))

    out = pl.pallas_call(
        kernel,
        out_shape=jax.ShapeDtypeStruct((B, H, Cout * W), jnp.float32),
        grid=(B // bb,),
        in_specs=[
            smem, smem, smem,                                        # w1, wh, wv (scalars)
            full((C1, Cout * W)),                                    # w2 lane rows
            pl.BlockSpec((bb, Cin, H, W), lambda i: (i, 0, 0, 0)),   # x
            full((W, 2 * Kw)), full((2 * Kw, W)),                    # horizontal bases
            full((2 * Kh, H)), full((H, 2 * Kh)),                    # vertical bases
        ],
        out_specs=pl.BlockSpec((bb, H, Cout * W), lambda i: (i, 0, 0)),
        compiler_params=pltpu.CompilerParams(
            dimension_semantics=("parallel",),
            vmem_limit_bytes=vmem_limit,
        ),
        cost_estimate=pl.CostEstimate(flops=int(B * flops_img), transcendentals=0,
                                      bytes_accessed=int(bytes_accessed)),
    )(w1, wh, wv, w2r, x, fw, iw, fh, ih)

    # layout plumbing back to NCHW (outside the kernel; lane-dense slab in HBM)
    return out.reshape(B, H, Cout, W).transpose(0, 2, 1, 3)


# --------------------------- pure-JAX reference ------------------------------

def reference_forward(x, params):
    w1, wh, wv, w2 = params["w1"], params["wh"], params["wv"], params["w2"]
    H, W = x.shape[2], x.shape[3]
    prec = jax.lax.Precision.HIGHEST
    y = _lrelu(jnp.einsum("oc,bchw->bohw", w1, x, precision=prec))
    C1 = y.shape[1]
    Ch = C1 // 2
    yh, yv = y[:, :Ch], y[:, Ch:]

    hf = jnp.fft.rfft(yh, axis=-1, norm="ortho")
    hcat = jnp.concatenate([hf.real, hf.imag], axis=1)
    hc = _lrelu(jnp.einsum("oc,bchk->bohk", wh, hcat, precision=prec))
    hcplx = jax.lax.complex(hc[:, :Ch], hc[:, Ch:])
    hor = jnp.fft.irfft(hcplx, n=W, axis=-1, norm="ortho")

    vf = jnp.fft.rfft(yv, axis=-2, norm="ortho")
    vcat = jnp.concatenate([vf.real, vf.imag], axis=1)
    vc = _lrelu(jnp.einsum("oc,bckw->bokw", wv, vcat, precision=prec))
    vcplx = jax.lax.complex(vc[:, :Ch], vc[:, Ch:])
    vert = jnp.fft.irfft(vcplx, n=H, axis=-2, norm="ortho")

    fu = jnp.concatenate([hor, vert], axis=1)
    z = y + fu
    return jnp.einsum("oc,bchw->bohw", w2, z, precision=prec)


# --------------------------- params ------------------------------------------

def weight_norm_1x1(v, g):
    # PyTorch weight_norm(dim=0) on a (out, in, 1, 1) conv kernel:
    # w = g * v / ||v||_2 with the norm over (in, kh, kw) per output channel.
    return g[:, None] * v / jnp.sqrt(jnp.sum(v * v, axis=1, keepdims=True))


if __name__ == "__main__":
    B, Cin, H, W = 2, 4, 16, 16
    Cout = 8                   # SpectralTransform(in_channels=4, out_channels=8)
    C1 = Cout // 2

    key = jax.random.PRNGKey(0)
    ks = jax.random.split(key, 9)
    v1 = 0.3 * jax.random.normal(ks[0], (C1, Cin), jnp.float32)
    g1 = jax.random.uniform(ks[1], (C1,), jnp.float32, 0.5, 1.5)
    vh = 0.3 * jax.random.normal(ks[2], (C1, C1), jnp.float32)
    gh = jax.random.uniform(ks[3], (C1,), jnp.float32, 0.5, 1.5)
    vv = 0.3 * jax.random.normal(ks[4], (C1, C1), jnp.float32)
    gv = jax.random.uniform(ks[5], (C1,), jnp.float32, 0.5, 1.5)
    v2 = 0.3 * jax.random.normal(ks[6], (Cout, C1), jnp.float32)
    g2 = jax.random.uniform(ks[7], (Cout,), jnp.float32, 0.5, 1.5)

    params = {
        "w1": weight_norm_1x1(v1, g1),   # conv1.0
        "wh": weight_norm_1x1(vh, gh),   # fu.conv_layer_hor
        "wv": weight_norm_1x1(vv, gv),   # fu.conv_layer_vert
        "w2": weight_norm_1x1(v2, g2),   # conv2
    }

    x = jax.random.normal(ks[8], (B, Cin, H, W), jnp.float32)

    out = jax.block_until_ready(spectral_transform_forward(x, params))
    assert out.shape == (B, Cout, H, W) and out.dtype == jnp.float32

    ref = jax.block_until_ready(reference_forward(x, params))
    max_diff = float(jnp.max(jnp.abs(out - ref)))
    scale = float(jnp.max(jnp.abs(ref))) + 1e-6
    # bf16 single-pass DFT matmuls (f32 accumulation): expect ~1e-3 level error.
    assert max_diff / scale < 2e-2, (max_diff, scale)

    print("KERNEL_OK")
</pallas_src>

<mosaic_0001>
module attributes {stable_mosaic.version = 11 : i64} {
  func.func @_spectral_kernel(%arg0: i32, %arg1: memref<4x4xf32, #tpu.memory_space<smem>>, %arg2: memref<4x4xf32, #tpu.memory_space<smem>>, %arg3: memref<4x4xf32, #tpu.memory_space<smem>>, %arg4: memref<4x128xf32, #tpu.memory_space<vmem>>, %arg5: memref<1x4x16x16xf32, #tpu.memory_space<vmem>>, %arg6: memref<16x18xbf16, #tpu.memory_space<vmem>>, %arg7: memref<18x16xbf16, #tpu.memory_space<vmem>>, %arg8: memref<18x16xbf16, #tpu.memory_space<vmem>>, %arg9: memref<16x18xbf16, #tpu.memory_space<vmem>>, %arg10: memref<1x16x128xf32, #tpu.memory_space<vmem>>) attributes {dimension_semantics = [#tpu.dimension_semantics<parallel>], iteration_bounds = array<i64: 2>, scalar_prefetch = 0 : i64, scratch_operands = 0 : i64, tpu.core_type = #tpu.core_type<tc>, window_params = [{transform_indices = @transform_0, window_bounds = array<i64: 4, 4>}, {transform_indices = @transform_1, window_bounds = array<i64: 4, 4>}, {transform_indices = @transform_2, window_bounds = array<i64: 4, 4>}, {pipeline_mode = #tpu.pipeline_mode<synchronous>, transform_indices = @transform_3, window_bounds = array<i64: 4, 128>}, {transform_indices = @transform_4, window_bounds = array<i64: 1, 4, 16, 16>}, {pipeline_mode = #tpu.pipeline_mode<synchronous>, transform_indices = @transform_5, window_bounds = array<i64: 16, 18>}, {pipeline_mode = #tpu.pipeline_mode<synchronous>, transform_indices = @transform_6, window_bounds = array<i64: 18, 16>}, {pipeline_mode = #tpu.pipeline_mode<synchronous>, transform_indices = @transform_7, window_bounds = array<i64: 18, 16>}, {pipeline_mode = #tpu.pipeline_mode<synchronous>, transform_indices = @transform_8, window_bounds = array<i64: 16, 18>}, {transform_indices = @transform_9, window_bounds = array<i64: 1, 16, 128>}]} {
    %c0 = arith.constant 0 : index
    %c0_0 = arith.constant 0 : index
    %0 = vector.load %arg4[%c0, %c0_0] : memref<4x128xf32, #tpu.memory_space<vmem>>, vector<4x128xf32>
    %c0_1 = arith.constant 0 : index
    %c0_2 = arith.constant 0 : index
    %1 = memref.load %arg1[%c0_1, %c0_2] : memref<4x4xf32, #tpu.memory_space<smem>>
    %c0_3 = arith.constant 0 : index
    %c0_4 = arith.constant 0 : index
    %c0_5 = arith.constant 0 : index
    %c0_6 = arith.constant 0 : index
    %2 = vector.load %arg5[%c0_3, %c0_4, %c0_5, %c0_6] : memref<1x4x16x16xf32, #tpu.memory_space<vmem>>, vector<1x1x16x16xf32>
    %3 = vector.shape_cast %2 : vector<1x1x16x16xf32> to vector<16x16xf32>
    %4 = vector.broadcast %1 : f32 to vector<16x16xf32>
    %5 = arith.mulf %4, %3 : vector<16x16xf32>
    %c0_7 = arith.constant 0 : index
    %c1 = arith.constant 1 : index
    %6 = memref.load %arg1[%c0_7, %c1] : memref<4x4xf32, #tpu.memory_space<smem>>
    %c0_8 = arith.constant 0 : index
    %c1_9 = arith.constant 1 : index
    %c0_10 = arith.constant 0 : index
    %c0_11 = arith.constant 0 : index
    %7 = vector.load %arg5[%c0_8, %c1_9, %c0_10, %c0_11] : memref<1x4x16x16xf32, #tpu.memory_space<vmem>>, vector<1x1x16x16xf32>
    %8 = vector.shape_cast %7 : vector<1x1x16x16xf32> to vector<16x16xf32>
    %9 = vector.broadcast %6 : f32 to vector<16x16xf32>
    %10 = arith.mulf %9, %8 : vector<16x16xf32>
    %11 = arith.addf %5, %10 : vector<16x16xf32>
    %c0_12 = arith.constant 0 : index
    %c2 = arith.constant 2 : index
    %12 = memref.load %arg1[%c0_12, %c2] : memref<4x4xf32, #tpu.memory_space<smem>>
    %c0_13 = arith.constant 0 : index
    %c2_14 = arith.constant 2 : index
    %c0_15 = arith.constant 0 : index
    %c0_16 = arith.constant 0 : index
    %13 = vector.load %arg5[%c0_13, %c2_14, %c0_15, %c0_16] : memref<1x4x16x16xf32, #tpu.memory_space<vmem>>, vector<1x1x16x16xf32>
    %14 = vector.shape_cast %13 : vector<1x1x16x16xf32> to vector<16x16xf32>
    %15 = vector.broadcast %12 : f32 to vector<16x16xf32>
    %16 = arith.mulf %15, %14 : vector<16x16xf32>
    %17 = arith.addf %11, %16 : vector<16x16xf32>
    %c0_17 = arith.constant 0 : index
    %c3 = arith.constant 3 : index
    %18 = memref.load %arg1[%c0_17, %c3] : memref<4x4xf32, #tpu.memory_space<smem>>
    %c0_18 = arith.constant 0 : index
    %c3_19 = arith.constant 3 : index
    %c0_20 = arith.constant 0 : index
    %c0_21 = arith.constant 0 : index
    %19 = vector.load %arg5[%c0_18, %c3_19, %c0_20, %c0_21] : memref<1x4x16x16xf32, #tpu.memory_space<vmem>>, vector<1x1x16x16xf32>
    %20 = vector.shape_cast %19 : vector<1x1x16x16xf32> to vector<16x16xf32>
    %21 = vector.broadcast %18 : f32 to vector<16x16xf32>
    %22 = arith.mulf %21, %20 : vector<16x16xf32>
    %23 = arith.addf %17, %22 : vector<16x16xf32>
    %cst = arith.constant 0.000000e+00 : f32
    %24 = vector.broadcast %cst : f32 to vector<16x16xf32>
    %25 = arith.cmpf oge, %23, %24 : vector<16x16xf32>
    %cst_22 = arith.constant 5.000000e-02 : f32
    %26 = vector.broadcast %cst_22 : f32 to vector<16x16xf32>
    %27 = arith.mulf %26, %23 : vector<16x16xf32>
    %28 = arith.select %25, %23, %27 : vector<16x16xi1>, vector<16x16xf32>
    %c1_23 = arith.constant 1 : index
    %c0_24 = arith.constant 0 : index
    %29 = memref.load %arg1[%c1_23, %c0_24] : memref<4x4xf32, #tpu.memory_space<smem>>
    %c0_25 = arith.constant 0 : index
    %c0_26 = arith.constant 0 : index
    %c0_27 = arith.constant 0 : index
    %c0_28 = arith.constant 0 : index
    %30 = vector.load %arg5[%c0_25, %c0_26, %c0_27, %c0_28] : memref<1x4x16x16xf32, #tpu.memory_space<vmem>>, vector<1x1x16x16xf32>
    %31 = vector.shape_cast %30 : vector<1x1x16x16xf32> to vector<16x16xf32>
    %32 = vector.broadcast %29 : f32 to vector<16x16xf32>
    %33 = arith.mulf %32, %31 : vector<16x16xf32>
    %c1_29 = arith.constant 1 : index
    %c1_30 = arith.constant 1 : index
    %34 = memref.load %arg1[%c1_29, %c1_30] : memref<4x4xf32, #tpu.memory_space<smem>>
    %c0_31 = arith.constant 0 : index
    %c1_32 = arith.constant 1 : index
    %c0_33 = arith.constant 0 : index
    %c0_34 = arith.constant 0 : index
    %35 = vector.load %arg5[%c0_31, %c1_32, %c0_33, %c0_34] : memref<1x4x16x16xf32, #tpu.memory_space<vmem>>, vector<1x1x16x16xf32>
    %36 = vector.shape_cast %35 : vector<1x1x16x16xf32> to vector<16x16xf32>
    %37 = vector.broadcast %34 : f32 to vector<16x16xf32>
    %38 = arith.mulf %37, %36 : vector<16x16xf32>
    %39 = arith.addf %33, %38 : vector<16x16xf32>
    %c1_35 = arith.constant 1 : index
    %c2_36 = arith.constant 2 : index
    %40 = memref.load %arg1[%c1_35, %c2_36] : memref<4x4xf32, #tpu.memory_space<smem>>
    %c0_37 = arith.constant 0 : index
    %c2_38 = arith.constant 2 : index
    %c0_39 = arith.constant 0 : index
    %c0_40 = arith.constant 0 : index
    %41 = vector.load %arg5[%c0_37, %c2_38, %c0_39, %c0_40] : memref<1x4x16x16xf32, #tpu.memory_space<vmem>>, vector<1x1x16x16xf32>
    %42 = vector.shape_cast %41 : vector<1x1x16x16xf32> to vector<16x16xf32>
    %43 = vector.broadcast %40 : f32 to vector<16x16xf32>
    %44 = arith.mulf %43, %42 : vector<16x16xf32>
    %45 = arith.addf %39, %44 : vector<16x16xf32>
    %c1_41 = arith.constant 1 : index
    %c3_42 = arith.constant 3 : index
    %46 = memref.load %arg1[%c1_41, %c3_42] : memref<4x4xf32, #tpu.memory_space<smem>>
    %c0_43 = arith.constant 0 : index
    %c3_44 = arith.constant 3 : index
    %c0_45 = arith.constant 0 : index
    %c0_46 = arith.constant 0 : index
    %47 = vector.load %arg5[%c0_43, %c3_44, %c0_45, %c0_46] : memref<1x4x16x16xf32, #tpu.memory_space<vmem>>, vector<1x1x16x16xf32>
    %48 = vector.shape_cast %47 : vector<1x1x16x16xf32> to vector<16x16xf32>
    %49 = vector.broadcast %46 : f32 to vector<16x16xf32>
    %50 = arith.mulf %49, %48 : vector<16x16xf32>
    %51 = arith.addf %45, %50 : vector<16x16xf32>
    %cst_47 = arith.constant 0.000000e+00 : f32
    %52 = vector.broadcast %cst_47 : f32 to vector<16x16xf32>
    %53 = arith.cmpf oge, %51, %52 : vector<16x16xf32>
    %cst_48 = arith.constant 5.000000e-02 : f32
    %54 = vector.broadcast %cst_48 : f32 to vector<16x16xf32>
    %55 = arith.mulf %54, %51 : vector<16x16xf32>
    %56 = arith.select %53, %51, %55 : vector<16x16xi1>, vector<16x16xf32>
    %c2_49 = arith.constant 2 : index
    %c0_50 = arith.constant 0 : index
    %57 = memref.load %arg1[%c2_49, %c0_50] : memref<4x4xf32, #tpu.memory_space<smem>>
    %c0_51 = arith.constant 0 : index
    %c0_52 = arith.constant 0 : index
    %c0_53 = arith.constant 0 : index
    %c0_54 = arith.constant 0 : index
    %58 = vector.load %arg5[%c0_51, %c0_52, %c0_53, %c0_54] : memref<1x4x16x16xf32, #tpu.memory_space<vmem>>, vector<1x1x16x16xf32>
    %59 = vector.shape_cast %58 : vector<1x1x16x16xf32> to vector<16x16xf32>
    %60 = vector.broadcast %57 : f32 to vector<16x16xf32>
    %61 = arith.mulf %60, %59 : vector<16x16xf32>
    %c2_55 = arith.constant 2 : index
    %c1_56 = arith.constant 1 : index
    %62 = memref.load %arg1[%c2_55, %c1_56] : memref<4x4xf32, #tpu.memory_space<smem>>
    %c0_57 = arith.constant 0 : index
    %c1_58 = arith.constant 1 : index
    %c0_59 = arith.constant 0 : index
    %c0_60 = arith.constant 0 : index
    %63 = vector.load %arg5[%c0_57, %c1_58, %c0_59, %c0_60] : memref<1x4x16x16xf32, #tpu.memory_space<vmem>>, vector<1x1x16x16xf32>
    %64 = vector.shape_cast %63 : vector<1x1x16x16xf32> to vector<16x16xf32>
    %65 = vector.broadcast %62 : f32 to vector<16x16xf32>
    %66 = arith.mulf %65, %64 : vector<16x16xf32>
    %67 = arith.addf %61, %66 : vector<16x16xf32>
    %c2_61 = arith.constant 2 : index
    %c2_62 = arith.constant 2 : index
    %68 = memref.load %arg1[%c2_61, %c2_62] : memref<4x4xf32, #tpu.memory_space<smem>>
    %c0_63 = arith.constant 0 : index
    %c2_64 = arith.constant 2 : index
    %c0_65 = arith.constant 0 : index
    %c0_66 = arith.constant 0 : index
    %69 = vector.load %arg5[%c0_63, %c2_64, %c0_65, %c0_66] : memref<1x4x16x16xf32, #tpu.memory_space<vmem>>, vector<1x1x16x16xf32>
    %70 = vector.shape_cast %69 : vector<1x1x16x16xf32> to vector<16x16xf32>
    %71 = vector.broadcast %68 : f32 to vector<16x16xf32>
    %72 = arith.mulf %71, %70 : vector<16x16xf32>
    %73 = arith.addf %67, %72 : vector<16x16xf32>
    %c2_67 = arith.constant 2 : index
    %c3_68 = arith.constant 3 : index
    %74 = memref.load %arg1[%c2_67, %c3_68] : memref<4x4xf32, #tpu.memory_space<smem>>
    %c0_69 = arith.constant 0 : index
    %c3_70 = arith.constant 3 : index
    %c0_71 = arith.constant 0 : index
    %c0_72 = arith.constant 0 : index
    %75 = vector.load %arg5[%c0_69, %c3_70, %c0_71, %c0_72] : memref<1x4x16x16xf32, #tpu.memory_space<vmem>>, vector<1x1x16x16xf32>
    %76 = vector.shape_cast %75 : vector<1x1x16x16xf32> to vector<16x16xf32>
    %77 = vector.broadcast %74 : f32 to vector<16x16xf32>
    %78 = arith.mulf %77, %76 : vector<16x16xf32>
    %79 = arith.addf %73, %78 : vector<16x16xf32>
    %cst_73 = arith.constant 0.000000e+00 : f32
    %80 = vector.broadcast %cst_73 : f32 to vector<16x16xf32>
    %81 = arith.cmpf oge, %79, %80 : vector<16x16xf32>
    %cst_74 = arith.constant 5.000000e-02 : f32
    %82 = vector.broadcast %cst_74 : f32 to vector<16x16xf32>
    %83 = arith.mulf %82, %79 : vector<16x16xf32>
    %84 = arith.select %81, %79, %83 : vector<16x16xi1>, vector<16x16xf32>
    %c3_75 = arith.constant 3 : index
    %c0_76 = arith.constant 0 : index
    %85 = memref.load %arg1[%c3_75, %c0_76] : memref<4x4xf32, #tpu.memory_space<smem>>
    %c0_77 = arith.constant 0 : index
    %c0_78 = arith.constant 0 : index
    %c0_79 = arith.constant 0 : index
    %c0_80 = arith.constant 0 : index
    %86 = vector.load %arg5[%c0_77, %c0_78, %c0_79, %c0_80] : memref<1x4x16x16xf32, #tpu.memory_space<vmem>>, vector<1x1x16x16xf32>
    %87 = vector.shape_cast %86 : vector<1x1x16x16xf32> to vector<16x16xf32>
    %88 = vector.broadcast %85 : f32 to vector<16x16xf32>
    %89 = arith.mulf %88, %87 : vector<16x16xf32>
    %c3_81 = arith.constant 3 : index
    %c1_82 = arith.constant 1 : index
    %90 = memref.load %arg1[%c3_81, %c1_82] : memref<4x4xf32, #tpu.memory_space<smem>>
    %c0_83 = arith.constant 0 : index
    %c1_84 = arith.constant 1 : index
    %c0_85 = arith.constant 0 : index
    %c0_86 = arith.constant 0 : index
    %91 = vector.load %arg5[%c0_83, %c1_84, %c0_85, %c0_86] : memref<1x4x16x16xf32, #tpu.memory_space<vmem>>, vector<1x1x16x16xf32>
    %92 = vector.shape_cast %91 : vector<1x1x16x16xf32> to vector<16x16xf32>
    %93 = vector.broadcast %90 : f32 to vector<16x16xf32>
    %94 = arith.mulf %93, %92 : vector<16x16xf32>
    %95 = arith.addf %89, %94 : vector<16x16xf32>
    %c3_87 = arith.constant 3 : index
    %c2_88 = arith.constant 2 : index
    %96 = memref.load %arg1[%c3_87, %c2_88] : memref<4x4xf32, #tpu.memory_space<smem>>
    %c0_89 = arith.constant 0 : index
    %c2_90 = arith.constant 2 : index
    %c0_91 = arith.constant 0 : index
    %c0_92 = arith.constant 0 : index
    %97 = vector.load %arg5[%c0_89, %c2_90, %c0_91, %c0_92] : memref<1x4x16x16xf32, #tpu.memory_space<vmem>>, vector<1x1x16x16xf32>
    %98 = vector.shape_cast %97 : vector<1x1x16x16xf32> to vector<16x16xf32>
    %99 = vector.broadcast %96 : f32 to vector<16x16xf32>
    %100 = arith.mulf %99, %98 : vector<16x16xf32>
    %101 = arith.addf %95, %100 : vector<16x16xf32>
    %c3_93 = arith.constant 3 : index
    %c3_94 = arith.constant 3 : index
    %102 = memref.load %arg1[%c3_93, %c3_94] : memref<4x4xf32, #tpu.memory_space<smem>>
    %c0_95 = arith.constant 0 : index
    %c3_96 = arith.constant 3 : index
    %c0_97 = arith.constant 0 : index
    %c0_98 = arith.constant 0 : index
    %103 = vector.load %arg5[%c0_95, %c3_96, %c0_97, %c0_98] : memref<1x4x16x16xf32, #tpu.memory_space<vmem>>, vector<1x1x16x16xf32>
    %104 = vector.shape_cast %103 : vector<1x1x16x16xf32> to vector<16x16xf32>
    %105 = vector.broadcast %102 : f32 to vector<16x16xf32>
    %106 = arith.mulf %105, %104 : vector<16x16xf32>
    %107 = arith.addf %101, %106 : vector<16x16xf32>
    %cst_99 = arith.constant 0.000000e+00 : f32
    %108 = vector.broadcast %cst_99 : f32 to vector<16x16xf32>
    %109 = arith.cmpf oge, %107, %108 : vector<16x16xf32>
    %cst_100 = arith.constant 5.000000e-02 : f32
    %110 = vector.broadcast %cst_100 : f32 to vector<16x16xf32>
    %111 = arith.mulf %110, %107 : vector<16x16xf32>
    %112 = arith.select %109, %107, %111 : vector<16x16xi1>, vector<16x16xf32>
    %cst_101 = arith.constant 0.000000e+00 : f32
    %113 = vector.broadcast %cst_101 : f32 to vector<16x128xf32>
    %114 = tpu.concatenate %28, %56 in 0 : vector<16x16xf32>, vector<16x16xf32> -> vector<32x16xf32>
    %115 = arith.truncf %114 : vector<32x16xf32> to vector<32x16xbf16>
    %c0_102 = arith.constant 0 : index
    %c0_103 = arith.constant 0 : index
    %116 = vector.load %arg6[%c0_102, %c0_103] : memref<16x18xbf16, #tpu.memory_space<vmem>>, vector<16x18xbf16>
    %cst_104 = arith.constant dense<0.000000e+00> : vector<32x18xf32>
    %117 = tpu.matmul %115, %116, %cst_104 {dimension_numbers = #tpu.dot_dimension_numbers<[1], [0], [0], [1], [0, 0, 1, 1], [], []>} : vector<32x16xbf16>, vector<16x18xbf16>, vector<32x18xf32> -> vector<32x18xf32>
    %118 = vector.extract_strided_slice %117 {offsets = [0, 0], sizes = [16, 9], strides = [1, 1]} : vector<32x18xf32> to vector<16x9xf32>
    %119 = vector.extract_strided_slice %117 {offsets = [16, 0], sizes = [16, 9], strides = [1, 1]} : vector<32x18xf32> to vector<16x9xf32>
    %120 = vector.extract_strided_slice %117 {offsets = [0, 9], sizes = [16, 9], strides = [1, 1]} : vector<32x18xf32> to vector<16x9xf32>
    %121 = vector.extract_strided_slice %117 {offsets = [16, 9], sizes = [16, 9], strides = [1, 1]} : vector<32x18xf32> to vector<16x9xf32>
    %c0_105 = arith.constant 0 : index
    %c0_106 = arith.constant 0 : index
    %122 = memref.load %arg2[%c0_105, %c0_106] : memref<4x4xf32, #tpu.memory_space<smem>>
    %123 = vector.broadcast %122 : f32 to vector<16x9xf32>
    %124 = arith.mulf %123, %118 : vector<16x9xf32>
    %c2_107 = arith.constant 2 : index
    %c0_108 = arith.constant 0 : index
    %125 = memref.load %arg2[%c2_107, %c0_108] : memref<4x4xf32, #tpu.memory_space<smem>>
    %126 = vector.broadcast %125 : f32 to vector<16x9xf32>
    %127 = arith.mulf %126, %118 : vector<16x9xf32>
    %c0_109 = arith.constant 0 : index
    %c1_110 = arith.constant 1 : index
    %128 = memref.load %arg2[%c0_109, %c1_110] : memref<4x4xf32, #tpu.memory_space<smem>>
    %129 = vector.broadcast %128 : f32 to vector<16x9xf32>
    %130 = arith.mulf %129, %119 : vector<16x9xf32>
    %131 = arith.addf %124, %130 : vector<16x9xf32>
    %c2_111 = arith.constant 2 : index
    %c1_112 = arith.constant 1 : index
    %132 = memref.load %arg2[%c2_111, %c1_112] : memref<4x4xf32, #tpu.memory_space<smem>>
    %133 = vector.broadcast %132 : f32 to vector<16x9xf32>
    %134 = arith.mulf %133, %119 : vector<16x9xf32>
    %135 = arith.addf %127, %134 : vector<16x9xf32>
    %c0_113 = arith.constant 0 : index
    %c2_114 = arith.constant 2 : index
    %136 = memref.load %arg2[%c0_113, %c2_114] : memref<4x4xf32, #tpu.memory_space<smem>>
    %137 = vector.broadcast %136 : f32 to vector<16x9xf32>
    %138 = arith.mulf %137, %120 : vector<16x9xf32>
    %139 = arith.addf %131, %138 : vector<16x9xf32>
    %c2_115 = arith.constant 2 : index
    %c2_116 = arith.constant 2 : index
    %140 = memref.load %arg2[%c2_115, %c2_116] : memref<4x4xf32, #tpu.memory_space<smem>>
    %141 = vector.broadcast %140 : f32 to vector<16x9xf32>
    %142 = arith.mulf %141, %120 : vector<16x9xf32>
    %143 = arith.addf %135, %142 : vector<16x9xf32>
    %c0_117 = arith.constant 0 : index
    %c3_118 = arith.constant 3 : index
    %144 = memref.load %arg2[%c0_117, %c3_118] : memref<4x4xf32, #tpu.memory_space<smem>>
    %145 = vector.broadcast %144 : f32 to vector<16x9xf32>
    %146 = arith.mulf %145, %121 : vector<16x9xf32>
    %147 = arith.addf %139, %146 : vector<16x9xf32>
    %c2_119 = arith.constant 2 : index
    %c3_120 = arith.constant 3 : index
    %148 = memref.load %arg2[%c2_119, %c3_120] : memref<4x4xf32, #tpu.memory_space<smem>>
    %149 = vector.broadcast %148 : f32 to vector<16x9xf32>
    %150 = arith.mulf %149, %121 : vector<16x9xf32>
    %151 = arith.addf %143, %150 : vector<16x9xf32>
    %c1_121 = arith.constant 1 : index
    %c0_122 = arith.constant 0 : index
    %152 = memref.load %arg2[%c1_121, %c0_122] : memref<4x4xf32, #tpu.memory_space<smem>>
    %153 = vector.broadcast %152 : f32 to vector<16x9xf32>
    %154 = arith.mulf %153, %118 : vector<16x9xf32>
    %c3_123 = arith.constant 3 : index
    %c0_124 = arith.constant 0 : index
    %155 = memref.load %arg2[%c3_123, %c0_124] : memref<4x4xf32, #tpu.memory_space<smem>>
    %156 = vector.broadcast %155 : f32 to vector<16x9xf32>
    %157 = arith.mulf %156, %118 : vector<16x9xf32>
    %c1_125 = arith.constant 1 : index
    %c1_126 = arith.constant 1 : index
    %158 = memref.load %arg2[%c1_125, %c1_126] : memref<4x4xf32, #tpu.memory_space<smem>>
    %159 = vector.broadcast %158 : f32 to vector<16x9xf32>
    %160 = arith.mulf %159, %119 : vector<16x9xf32>
    %161 = arith.addf %154, %160 : vector<16x9xf32>
    %c3_127 = arith.constant 3 : index
    %c1_128 = arith.constant 1 : index
    %162 = memref.load %arg2[%c3_127, %c1_128] : memref<4x4xf32, #tpu.memory_space<smem>>
    %163 = vector.broadcast %162 : f32 to vector<16x9xf32>
    %164 = arith.mulf %163, %119 : vector<16x9xf32>
    %165 = arith.addf %157, %164 : vector<16x9xf32>
    %c1_129 = arith.constant 1 : index
    %c2_130 = arith.constant 2 : index
    %166 = memref.load %arg2[%c1_129, %c2_130] : memref<4x4xf32, #tpu.memory_space<smem>>
    %167 = vector.broadcast %166 : f32 to vector<16x9xf32>
    %168 = arith.mulf %167, %120 : vector<16x9xf32>
    %169 = arith.addf %161, %168 : vector<16x9xf32>
    %c3_131 = arith.constant 3 : index
    %c2_132 = arith.constant 2 : index
    %170 = memref.load %arg2[%c3_131, %c2_132] : memref<4x4xf32, #tpu.memory_space<smem>>
    %171 = vector.broadcast %170 : f32 to vector<16x9xf32>
    %172 = arith.mulf %171, %120 : vector<16x9xf32>
    %173 = arith.addf %165, %172 : vector<16x9xf32>
    %c1_133 = arith.constant 1 : index
    %c3_134 = arith.constant 3 : index
    %174 = memref.load %arg2[%c1_133, %c3_134] : memref<4x4xf32, #tpu.memory_space<smem>>
    %175 = vector.broadcast %174 : f32 to vector<16x9xf32>
    %176 = arith.mulf %175, %121 : vector<16x9xf32>
    %177 = arith.addf %169, %176 : vector<16x9xf32>
    %c3_135 = arith.constant 3 : index
    %c3_136 = arith.constant 3 : index
    %178 = memref.load %arg2[%c3_135, %c3_136] : memref<4x4xf32, #tpu.memory_space<smem>>
    %179 = vector.broadcast %178 : f32 to vector<16x9xf32>
    %180 = arith.mulf %179, %121 : vector<16x9xf32>
    %181 = arith.addf %173, %180 : vector<16x9xf32>
    %182 = tpu.concatenate %147, %177 in 0 : vector<16x9xf32>, vector<16x9xf32> -> vector<32x9xf32>
    %183 = tpu.concatenate %151, %181 in 0 : vector<16x9xf32>, vector<16x9xf32> -> vector<32x9xf32>
    %184 = tpu.concatenate %182, %183 in 1 : vector<32x9xf32>, vector<32x9xf32> -> vector<32x18xf32>
    %cst_137 = arith.constant 0.000000e+00 : f32
    %185 = vector.broadcast %cst_137 : f32 to vector<32x18xf32>
    %186 = arith.cmpf oge, %184, %185 : vector<32x18xf32>
    %cst_138 = arith.constant 5.000000e-02 : f32
    %187 = vector.broadcast %cst_138 : f32 to vector<32x18xf32>
    %188 = arith.mulf %187, %184 : vector<32x18xf32>
    %189 = arith.select %186, %184, %188 : vector<32x18xi1>, vector<32x18xf32>
    %190 = arith.truncf %189 : vector<32x18xf32> to vector<32x18xbf16>
    %c0_139 = arith.constant 0 : index
    %c0_140 = arith.constant 0 : index
    %191 = vector.load %arg7[%c0_139, %c0_140] : memref<18x16xbf16, #tpu.memory_space<vmem>>, vector<18x16xbf16>
    %cst_141 = arith.constant dense<0.000000e+00> : vector<32x16xf32>
    %192 = tpu.matmul %190, %191, %cst_141 {dimension_numbers = #tpu.dot_dimension_numbers<[1], [0], [0], [1], [0, 0, 1, 1], [], []>} : vector<32x18xbf16>, vector<18x16xbf16>, vector<32x16xf32> -> vector<32x16xf32>
    %193 = vector.extract_strided_slice %192 {offsets = [0, 0], sizes = [16, 16], strides = [1, 1]} : vector<32x16xf32> to vector<16x16xf32>
    %194 = arith.addf %28, %193 : vector<16x16xf32>
    %195 = tpu.concatenate %194, %194, %194, %194, %194, %194, %194, %194 in 1 : vector<16x16xf32>, vector<16x16xf32>, vector<16x16xf32>, vector<16x16xf32>, vector<16x16xf32>, vector<16x16xf32>, vector<16x16xf32>, vector<16x16xf32> -> vector<16x128xf32>
    %196 = vector.extract_strided_slice %0 {offsets = [0, 0], sizes = [1, 128], strides = [1, 1]} : vector<4x128xf32> to vector<1x128xf32>
    %197 = vector.broadcast %196 : vector<1x128xf32> to vector<16x128xf32>
    %198 = arith.mulf %197, %195 : vector<16x128xf32>
    %199 = arith.addf %113, %198 : vector<16x128xf32>
    %200 = vector.extract_strided_slice %192 {offsets = [16, 0], sizes = [16, 16], strides = [1, 1]} : vector<32x16xf32> to vector<16x16xf32>
    %201 = arith.addf %56, %200 : vector<16x16xf32>
    %202 = tpu.concatenate %201, %201, %201, %201, %201, %201, %201, %201 in 1 : vector<16x16xf32>, vector<16x16xf32>, vector<16x16xf32>, vector<16x16xf32>, vector<16x16xf32>, vector<16x16xf32>, vector<16x16xf32>, vector<16x16xf32> -> vector<16x128xf32>
    %203 = vector.extract_strided_slice %0 {offsets = [1, 0], sizes = [1, 128], strides = [1, 1]} : vector<4x128xf32> to vector<1x128xf32>
    %204 = vector.broadcast %203 : vector<1x128xf32> to vector<16x128xf32>
    %205 = arith.mulf %204, %202 : vector<16x128xf32>
    %206 = arith.addf %199, %205 : vector<16x128xf32>
    %207 = tpu.concatenate %84, %112 in 1 : vector<16x16xf32>, vector<16x16xf32> -> vector<16x32xf32>
    %c0_142 = arith.constant 0 : index
    %c0_143 = arith.constant 0 : index
    %208 = vector.load %arg8[%c0_142, %c0_143] : memref<18x16xbf16, #tpu.memory_space<vmem>>, vector<18x16xbf16>
    %209 = arith.truncf %207 : vector<16x32xf32> to vector<16x32xbf16>
    %cst_144 = arith.constant dense<0.000000e+00> : vector<18x32xf32>
    %210 = tpu.matmul %208, %209, %cst_144 {dimension_numbers = #tpu.dot_dimension_numbers<[1], [0], [0], [1], [0, 0, 1, 1], [], []>} : vector<18x16xbf16>, vector<16x32xbf16>, vector<18x32xf32> -> vector<18x32xf32>
    %211 = vector.extract_strided_slice %210 {offsets = [0, 0], sizes = [9, 16], strides = [1, 1]} : vector<18x32xf32> to vector<9x16xf32>
    %212 = vector.extract_strided_slice %210 {offsets = [0, 16], sizes = [9, 16], strides = [1, 1]} : vector<18x32xf32> to vector<9x16xf32>
    %213 = vector.extract_strided_slice %210 {offsets = [9, 0], sizes = [9, 16], strides = [1, 1]} : vector<18x32xf32> to vector<9x16xf32>
    %214 = vector.extract_strided_slice %210 {offsets = [9, 16], sizes = [9, 16], strides = [1, 1]} : vector<18x32xf32> to vector<9x16xf32>
    %c0_145 = arith.constant 0 : index
    %c0_146 = arith.constant 0 : index
    %215 = memref.load %arg3[%c0_145, %c0_146] : memref<4x4xf32, #tpu.memory_space<smem>>
    %216 = vector.broadcast %215 : f32 to vector<9x16xf32>
    %217 = arith.mulf %216, %211 : vector<9x16xf32>
    %c2_147 = arith.constant 2 : index
    %c0_148 = arith.constant 0 : index
    %218 = memref.load %arg3[%c2_147, %c0_148] : memref<4x4xf32, #tpu.memory_space<smem>>
    %219 = vector.broadcast %218 : f32 to vector<9x16xf32>
    %220 = arith.mulf %219, %211 : vector<9x16xf32>
    %c0_149 = arith.constant 0 : index
    %c1_150 = arith.constant 1 : index
    %221 = memref.load %arg3[%c0_149, %c1_150] : memref<4x4xf32, #tpu.memory_space<smem>>
    %222 = vector.broadcast %221 : f32 to vector<9x16xf32>
    %223 = arith.mulf %222, %212 : vector<9x16xf32>
    %224 = arith.addf %217, %223 : vector<9x16xf32>
    %c2_151 = arith.constant 2 : index
    %c1_152 = arith.constant 1 : index
    %225 = memref.load %arg3[%c2_151, %c1_152] : memref<4x4xf32, #tpu.memory_space<smem>>
    %226 = vector.broadcast %225 : f32 to vector<9x16xf32>
    %227 = arith.mulf %226, %212 : vector<9x16xf32>
    %228 = arith.addf %220, %227 : vector<9x16xf32>
    %c0_153 = arith.constant 0 : index
    %c2_154 = arith.constant 2 : index
    %229 = memref.load %arg3[%c0_153, %c2_154] : memref<4x4xf32, #tpu.memory_space<smem>>
    %230 = vector.broadcast %229 : f32 to vector<9x16xf32>
    %231 = arith.mulf %230, %213 : vector<9x16xf32>
    %232 = arith.addf %224, %231 : vector<9x16xf32>
    %c2_155 = arith.constant 2 : index
    %c2_156 = arith.constant 2 : index
    %233 = memref.load %arg3[%c2_155, %c2_156] : memref<4x4xf32, #tpu.memory_space<smem>>
    %234 = vector.broadcast %233 : f32 to vector<9x16xf32>
    %235 = arith.mulf %234, %213 : vector<9x16xf32>
    %236 = arith.addf %228, %235 : vector<9x16xf32>
    %c0_157 = arith.constant 0 : index
    %c3_158 = arith.constant 3 : index
    %237 = memref.load %arg3[%c0_157, %c3_158] : memref<4x4xf32, #tpu.memory_space<smem>>
    %238 = vector.broadcast %237 : f32 to vector<9x16xf32>
    %239 = arith.mulf %238, %214 : vector<9x16xf32>
    %240 = arith.addf %232, %239 : vector<9x16xf32>
    %c2_159 = arith.constant 2 : index
    %c3_160 = arith.constant 3 : index
    %241 = memref.load %arg3[%c2_159, %c3_160] : memref<4x4xf32, #tpu.memory_space<smem>>
    %242 = vector.broadcast %241 : f32 to vector<9x16xf32>
    %243 = arith.mulf %242, %214 : vector<9x16xf32>
    %244 = arith.addf %236, %243 : vector<9x16xf32>
    %c1_161 = arith.constant 1 : index
    %c0_162 = arith.constant 0 : index
    %245 = memref.load %arg3[%c1_161, %c0_162] : memref<4x4xf32, #tpu.memory_space<smem>>
    %246 = vector.broadcast %245 : f32 to vector<9x16xf32>
    %247 = arith.mulf %246, %211 : vector<9x16xf32>
    %c3_163 = arith.constant 3 : index
    %c0_164 = arith.constant 0 : index
    %248 = memref.load %arg3[%c3_163, %c0_164] : memref<4x4xf32, #tpu.memory_space<smem>>
    %249 = vector.broadcast %248 : f32 to vector<9x16xf32>
    %250 = arith.mulf %249, %211 : vector<9x16xf32>
    %c1_165 = arith.constant 1 : index
    %c1_166 = arith.constant 1 : index
    %251 = memref.load %arg3[%c1_165, %c1_166] : memref<4x4xf32, #tpu.memory_space<smem>>
    %252 = vector.broadcast %251 : f32 to vector<9x16xf32>
    %253 = arith.mulf %252, %212 : vector<9x16xf32>
    %254 = arith.addf %247, %253 : vector<9x16xf32>
    %c3_167 = arith.constant 3 : index
    %c1_168 = arith.constant 1 : index
    %255 = memref.load %arg3[%c3_167, %c1_168] : memref<4x4xf32, #tpu.memory_space<smem>>
    %256 = vector.broadcast %255 : f32 to vector<9x16xf32>
    %257 = arith.mulf %256, %212 : vector<9x16xf32>
    %258 = arith.addf %250, %257 : vector<9x16xf32>
    %c1_169 = arith.constant 1 : index
    %c2_170 = arith.constant 2 : index
    %259 = memref.load %arg3[%c1_169, %c2_170] : memref<4x4xf32, #tpu.memory_space<smem>>
    %260 = vector.broadcast %259 : f32 to vector<9x16xf32>
    %261 = arith.mulf %260, %213 : vector<9x16xf32>
    %262 = arith.addf %254, %261 : vector<9x16xf32>
    %c3_171 = arith.constant 3 : index
    %c2_172 = arith.constant 2 : index
    %263 = memref.load %arg3[%c3_171, %c2_172] : memref<4x4xf32, #tpu.memory_space<smem>>
    %264 = vector.broadcast %263 : f32 to vector<9x16xf32>
    %265 = arith.mulf %264, %213 : vector<9x16xf32>
    %266 = arith.addf %258, %265 : vector<9x16xf32>
    %c1_173 = arith.constant 1 : index
    %c3_174 = arith.constant 3 : index
    %267 = memref.load %arg3[%c1_173, %c3_174] : memref<4x4xf32, #tpu.memory_space<smem>>
    %268 = vector.broadcast %267 : f32 to vector<9x16xf32>
    %269 = arith.mulf %268, %214 : vector<9x16xf32>
    %270 = arith.addf %262, %269 : vector<9x16xf32>
    %c3_175 = arith.constant 3 : index
    %c3_176 = arith.constant 3 : index
    %271 = memref.load %arg3[%c3_175, %c3_176] : memref<4x4xf32, #tpu.memory_space<smem>>
    %272 = vector.broadcast %271 : f32 to vector<9x16xf32>
    %273 = arith.mulf %272, %214 : vector<9x16xf32>
    %274 = arith.addf %266, %273 : vector<9x16xf32>
    %275 = tpu.concatenate %240, %270 in 1 : vector<9x16xf32>, vector<9x16xf32> -> vector<9x32xf32>
    %276 = tpu.concatenate %244, %274 in 1 : vector<9x16xf32>, vector<9x16xf32> -> vector<9x32xf32>
    %277 = tpu.concatenate %275, %276 in 0 : vector<9x32xf32>, vector<9x32xf32> -> vector<18x32xf32>
    %cst_177 = arith.constant 0.000000e+00 : f32
    %278 = vector.broadcast %cst_177 : f32 to vector<18x32xf32>
    %279 = arith.cmpf oge, %277, %278 : vector<18x32xf32>
    %cst_178 = arith.constant 5.000000e-02 : f32
    %280 = vector.broadcast %cst_178 : f32 to vector<18x32xf32>
    %281 = arith.mulf %280, %277 : vector<18x32xf32>
    %282 = arith.select %279, %277, %281 : vector<18x32xi1>, vector<18x32xf32>
    %c0_179 = arith.constant 0 : index
    %c0_180 = arith.constant 0 : index
    %283 = vector.load %arg9[%c0_179, %c0_180] : memref<16x18xbf16, #tpu.memory_space<vmem>>, vector<16x18xbf16>
    %284 = arith.truncf %282 : vector<18x32xf32> to vector<18x32xbf16>
    %cst_181 = arith.constant dense<0.000000e+00> : vector<16x32xf32>
    %285 = tpu.matmul %283, %284, %cst_181 {dimension_numbers = #tpu.dot_dimension_numbers<[1], [0], [0], [1], [0, 0, 1, 1], [], []>} : vector<16x18xbf16>, vector<18x32xbf16>, vector<16x32xf32> -> vector<16x32xf32>
    %286 = vector.extract_strided_slice %285 {offsets = [0, 0], sizes = [16, 16], strides = [1, 1]} : vector<16x32xf32> to vector<16x16xf32>
    %287 = arith.addf %84, %286 : vector<16x16xf32>
    %288 = tpu.concatenate %287, %287, %287, %287, %287, %287, %287, %287 in 1 : vector<16x16xf32>, vector<16x16xf32>, vector<16x16xf32>, vector<16x16xf32>, vector<16x16xf32>, vector<16x16xf32>, vector<16x16xf32>, vector<16x16xf32> -> vector<16x128xf32>
    %289 = vector.extract_strided_slice %0 {offsets = [2, 0], sizes = [1, 128], strides = [1, 1]} : vector<4x128xf32> to vector<1x128xf32>
    %290 = vector.broadcast %289 : vector<1x128xf32> to vector<16x128xf32>
    %291 = arith.mulf %290, %288 : vector<16x128xf32>
    %292 = arith.addf %206, %291 : vector<16x128xf32>
    %293 = vector.extract_strided_slice %285 {offsets = [0, 16], sizes = [16, 16], strides = [1, 1]} : vector<16x32xf32> to vector<16x16xf32>
    %294 = arith.addf %112, %293 : vector<16x16xf32>
    %295 = tpu.concatenate %294, %294, %294, %294, %294, %294, %294, %294 in 1 : vector<16x16xf32>, vector<16x16xf32>, vector<16x16xf32>, vector<16x16xf32>, vector<16x16xf32>, vector<16x16xf32>, vector<16x16xf32>, vector<16x16xf32> -> vector<16x128xf32>
    %296 = vector.extract_strided_slice %0 {offsets = [3, 0], sizes = [1, 128], strides = [1, 1]} : vector<4x128xf32> to vector<1x128xf32>
    %297 = vector.broadcast %296 : vector<1x128xf32> to vector<16x128xf32>
    %298 = arith.mulf %297, %295 : vector<16x128xf32>
    %299 = arith.addf %292, %298 : vector<16x128xf32>
    %c0_182 = arith.constant 0 : index
    %c0_183 = arith.constant 0 : index
    %c0_184 = arith.constant 0 : index
    %300 = vector.load %arg10[%c0_182, %c0_183, %c0_184] : memref<1x16x128xf32, #tpu.memory_space<vmem>>, vector<1x16x128xf32>
    %301 = vector.shape_cast %300 : vector<1x16x128xf32> to vector<16x128xf32>
    %302 = vector.shape_cast %299 : vector<16x128xf32> to vector<1x16x128xf32>
    tpu.vector_store %arg10[%c0_182, %c0_183, %c0_184], %302 {strides = array<i32>} : memref<1x16x128xf32, #tpu.memory_space<vmem>>, vector<1x16x128xf32>,
    return
  }
  func.func @transform_0(%arg0: i32) -> (i32, i32) {
    %c0_i32 = arith.constant 0 : i32
    %c0_i32_0 = arith.constant 0 : i32
    %c0_i32_1 = arith.constant 0 : i32
    return %c0_i32, %c0_i32_0 : i32, i32
  }
  func.func @transform_1(%arg0: i32) -> (i32, i32) {
    %c0_i32 = arith.constant 0 : i32
    %c0_i32_0 = arith.constant 0 : i32
    %c0_i32_1 = arith.constant 0 : i32
    return %c0_i32, %c0_i32_0 : i32, i32
  }
  func.func @transform_2(%arg0: i32) -> (i32, i32) {
    %c0_i32 = arith.constant 0 : i32
    %c0_i32_0 = arith.constant 0 : i32
    %c0_i32_1 = arith.constant 0 : i32
    return %c0_i32, %c0_i32_0 : i32, i32
  }
  func.func @transform_3(%arg0: i32) -> (i32, i32) {
    %c0_i32 = arith.constant 0 : i32
    %c0_i32_0 = arith.constant 0 : i32
    %c0_i32_1 = arith.constant 0 : i32
    return %c0_i32, %c0_i32_0 : i32, i32
  }
  func.func @transform_4(%arg0: i32) -> (i32, i32, i32, i32) {
    %c0_i32 = arith.constant 0 : i32
    %c0_i32_0 = arith.constant 0 : i32
    %c0_i32_1 = arith.constant 0 : i32
    %c0_i32_2 = arith.constant 0 : i32
    return %arg0, %c0_i32, %c0_i32_0, %c0_i32_1 : i32, i32, i32, i32
  }
  func.func @transform_5(%arg0: i32) -> (i32, i32) {
    %c0_i32 = arith.constant 0 : i32
    %c0_i32_0 = arith.constant 0 : i32
    %c0_i32_1 = arith.constant 0 : i32
    return %c0_i32, %c0_i32_0 : i32, i32
  }
  func.func @transform_6(%arg0: i32) -> (i32, i32) {
    %c0_i32 = arith.constant 0 : i32
    %c0_i32_0 = arith.constant 0 : i32
    %c0_i32_1 = arith.constant 0 : i32
    return %c0_i32, %c0_i32_0 : i32, i32
  }
  func.func @transform_7(%arg0: i32) -> (i32, i32) {
    %c0_i32 = arith.constant 0 : i32
    %c0_i32_0 = arith.constant 0 : i32
    %c0_i32_1 = arith.constant 0 : i32
    return %c0_i32, %c0_i32_0 : i32, i32
  }
  func.func @transform_8(%arg0: i32) -> (i32, i32) {
    %c0_i32 = arith.constant 0 : i32
    %c0_i32_0 = arith.constant 0 : i32
    %c0_i32_1 = arith.constant 0 : i32
    return %c0_i32, %c0_i32_0 : i32, i32
  }
  func.func @transform_9(%arg0: i32) -> (i32, i32, i32) {
    %c0_i32 = arith.constant 0 : i32
    %c0_i32_0 = arith.constant 0 : i32
    %c0_i32_1 = arith.constant 0 : i32
    return %arg0, %c0_i32, %c0_i32_0 : i32, i32, i32
  }
}

</mosaic_0001>

<llo_original>
// kernel: tpu_custom_call.1
$region0: #{tpu_custom_call.1}
  #allocation0 [shape = 'u32[]', space=smem, size = 0x4, offset = 0x4, fixed_abs, tag = 'smem constant byte address 0x4 - core index']
  #allocation1 [shape = 'u32[144,128]{1,0:T(1,128)}', space=vmem, size = 0x12000, scoped, tag = 'internal scratch']
  %s0 = inlined_call_operand.vmem [shape: f32[4,4], index: 0, kind: input, shape index: {}]
  %s1 = inlined_call_operand.vmem [shape: f32[4,4], index: 1, kind: input, shape index: {}]
  %s2 = inlined_call_operand.vmem [shape: f32[4,4], index: 2, kind: input, shape index: {}]
  %s3 = inlined_call_operand.vmem [shape: f32[4,128], index: 3, kind: input, shape index: {}]
  %s4 = inlined_call_operand.hbm [shape: f32[2,4,16,16], index: 4, kind: input, shape index: {}]
  %s5 = inlined_call_operand.vmem [shape: bf16[16,18], index: 5, kind: input, shape index: {}]
  %s6 = inlined_call_operand.vmem [shape: bf16[18,16], index: 6, kind: input, shape index: {}]
  %s7 = inlined_call_operand.vmem [shape: bf16[18,16], index: 7, kind: input, shape index: {}]
  %s8 = inlined_call_operand.vmem [shape: bf16[16,18], index: 8, kind: input, shape index: {}]
  %s9 = inlined_call_operand.hbm [shape: f32[2,16,128], index: 9, kind: output, shape index: {}]
  %s10 = sld [smem:[#allocation0]]
  $region85: #{tpu_custom_call.1} parent=0
    _
  %s12 = ssub.s32 1, %s10
  %s13 = scalar_select 0, %s12, %s10
  $region1: #{tpu_custom_call.1} parent=0
    #allocation2 [shape = 'u8[2048]{0}', space=smem, size = 0x800, scoped, tag = 'input window, operand 0, single buffered']
    #allocation3 [shape = 's32[2]{0}', space=sflag, size = 0x8, scoped, tag = 'scoped memory for tpu_custom_call.1']
    #allocation4 [shape = 's32[2]{0}', space=sflag, size = 0x8, scoped, tag = 'scoped memory for tpu_custom_call.1']
    #allocation5 [shape = 's32[2]{0}', space=sflag, size = 0x8, scoped, tag = 'scoped memory for tpu_custom_call.1']
    #allocation6 [shape = 'u8[2048]{0}', space=smem, size = 0x800, scoped, tag = 'input window, operand 1, single buffered']
    #allocation7 [shape = 's32[1]{0}', space=sflag, size = 0x4, scoped, tag = 'scoped memory for tpu_custom_call.1']
    #allocation8 [shape = 'u8[2048]{0}', space=smem, size = 0x800, scoped, tag = 'input window, operand 2, single buffered']
    #allocation9 [shape = 'u8[65536]{0}', space=vmem, size = 0x10000, scoped, tag = 'input window, operand 4']
    #allocation10 [shape = 'u8[16384]{0}', space=vmem, size = 0x4000, scoped, tag = 'output window, operand 0']
    %14 = vsyncpa [#allocation5], 0
    %15 = vsyncpa [#allocation7], 0
    %16 = vsyncpa [#allocation3], 0
    %s17 = scalar_lea.sflag [#allocation3], 1
    %18 = vsyncpa %s17, 0
    %19 = vsyncpa [#allocation4], 0
    %s20 = scalar_lea.sflag [#allocation4], 1
    %21 = vsyncpa %s20, 0
    loop: start=0, step=1, limit=4
    $region2: #{tpu_custom_call.1} parent=1 // loop_pre_header
      _
    $region3: #{tpu_custom_call.1} parent=1 // loop_header
      %s23 = sphi 0, %s27
      %p24 = scmp.ge.s32.totalorder %s23, 4
      %s31 = sphi 0, %s31
      %s33 = sphi 0, %s31
      %s34 = sphi 0, %s33
      %s48 = sphi 0, %s34
      %s52 = sphi 0, %s52
      %s54 = sphi 0, %s52
      %s55 = sphi 0, %s54
      %s69 = sphi 0, %s55
      %s73 = sphi 0, %s73
      %s75 = sphi 0, %s73
      %s76 = sphi 0, %s75
      %s90 = sphi 0, %s76
      %s94 = sphi 0, %s94
      %s96 = sphi 0, %s94
      %s97 = sphi 0, %s96
      %s111 = sphi 0, %s97
      %s117 = sphi 0, %s119
      %s120 = sphi 0, %s117
      %s121 = sphi 0, %s120
      %s137 = sphi 0, %s121
      %s141 = sphi 0, %s141
      %s143 = sphi 0, %s141
      %s144 = sphi 0, %s143
      %s158 = sphi 0, %s144
      %s162 = sphi 0, %s162
      %s164 = sphi 0, %s162
      %s165 = sphi 0, %s164
      %s179 = sphi 0, %s165
      %s183 = sphi 0, %s183
      %s185 = sphi 0, %s183
      %s186 = sphi 0, %s185
      %s200 = sphi 0, %s186
      %s204 = sphi 0, %s204
      %s206 = sphi 0, %s204
      %s207 = sphi 0, %s206
      %s221 = sphi 0, %s207
      %s227 = sphi 0, %s229
      %s230 = sphi 0, %s227
      %s231 = sphi 0, %s230
      %s247 = sphi 0, %s231
    $region4: #{tpu_custom_call.1} parent=1 // loop_header_branch
      %26 = sbr.rel (%p24) target = $region8
    $region5: #{tpu_custom_call.1} parent=1 // loop_body
      %s28 = ssub.s32 %s23, 1
      %s29 = ssub.s32 %s23, 2
      %s30 = sadd.s32 %s23, 1
      %s32 = sadd.s32 %s31, 1
      %p35 = scmp.eq.s32.totalorder %s23, 1
      %p36 = scmp.ne.s32.totalorder %s31, %s33
      %p37 = scmp.eq.s32.totalorder %s23, 0
      %p38 = por %p36, %p37
      %p39 = scmp.ne.s32.totalorder %s31, %s33
      %p40 = scmp.eq.s32.totalorder %s28, 1
      %p41 = por %p39, %p40
      %p42 = scmp.ne.s32.totalorder %s33, %s34
      %p43 = scmp.eq.s32.totalorder %s28, 0
      %p44 = por %p42, %p43
      %p45 = scmp.ne.s32.totalorder %s33, %s34
      %p46 = scmp.eq.s32.totalorder %s29, 1
      %p47 = por %p45, %p46
      %p49 = scmp.ne.s32.totalorder %s34, %s48
      %p50 = scmp.eq.s32.totalorder %s29, 0
      %p51 = por %p49, %p50
      %s53 = sadd.s32 %s52, 1
      %p56 = scmp.eq.s32.totalorder %s23, 1
      %p57 = scmp.ne.s32.totalorder %s52, %s54
      %p58 = scmp.eq.s32.totalorder %s23, 0
      %p59 = por %p57, %p58
      %p60 = scmp.ne.s32.totalorder %s52, %s54
      %p61 = scmp.eq.s32.totalorder %s28, 1
      %p62 = por %p60, %p61
      %p63 = scmp.ne.s32.totalorder %s54, %s55
      %p64 = scmp.eq.s32.totalorder %s28, 0
      %p65 = por %p63, %p64
      %p66 = scmp.ne.s32.totalorder %s54, %s55
      %p67 = scmp.eq.s32.totalorder %s29, 1
      %p68 = por %p66, %p67
      %p70 = scmp.ne.s32.totalorder %s55, %s69
      %p71 = scmp.eq.s32.totalorder %s29, 0
      %p72 = por %p70, %p71
      %s74 = sadd.s32 %s73, 1
      %p77 = scmp.eq.s32.totalorder %s23, 1
      %p78 = scmp.ne.s32.totalorder %s73, %s75
      %p79 = scmp.eq.s32.totalorder %s23, 0
      %p80 = por %p78, %p79
      %p81 = scmp.ne.s32.totalorder %s73, %s75
      %p82 = scmp.eq.s32.totalorder %s28, 1
      %p83 = por %p81, %p82
      %p84 = scmp.ne.s32.totalorder %s75, %s76
      %p85 = scmp.eq.s32.totalorder %s28, 0
      %p86 = por %p84, %p85
      %p87 = scmp.ne.s32.totalorder %s75, %s76
      %p88 = scmp.eq.s32.totalorder %s29, 1
      %p89 = por %p87, %p88
      %p91 = scmp.ne.s32.totalorder %s76, %s90
      %p92 = scmp.eq.s32.totalorder %s29, 0
      %p93 = por %p91, %p92
      %s95 = sadd.s32 %s94, 1
      %p98 = scmp.eq.s32.totalorder %s23, 1
      %p99 = scmp.ne.s32.totalorder %s94, %s96
      %p100 = scmp.eq.s32.totalorder %s23, 0
      %p101 = por %p99, %p100
      %p102 = scmp.ne.s32.totalorder %s94, %s96
      %p103 = scmp.eq.s32.totalorder %s28, 1
      %p104 = por %p102, %p103
      %p105 = scmp.ne.s32.totalorder %s96, %s97
      %p106 = scmp.eq.s32.totalorder %s28, 0
      %p107 = por %p105, %p106
      %p108 = scmp.ne.s32.totalorder %s96, %s97
      %p109 = scmp.eq.s32.totalorder %s29, 1
      %p110 = por %p108, %p109
      %p112 = scmp.ne.s32.totalorder %s97, %s111
      %p113 = scmp.eq.s32.totalorder %s29, 0
      %p114 = por %p112, %p113
      %s115 = ssub.s32 %s23, %s30
      %p116 = scmp.eq.s32.totalorder %s115, 0
      %s118 = sadd.s32 %s117, 1
      %s119 = scalar_select %p116, %s117, %s118
      %p122 = pneg %p116
      %p123 = scmp.eq.s32.totalorder %s23, 1
      %p124 = por %p122, %p123
      %p125 = scmp.ne.s32.totalorder %s117, %s120
      %p126 = scmp.eq.s32.totalorder %s23, 0
      %p127 = por %p125, %p126
      %p128 = scmp.ne.s32.totalorder %s117, %s120
      %p129 = scmp.eq.s32.totalorder %s28, 1
      %p130 = por %p128, %p129
      %p131 = scmp.ne.s32.totalorder %s120, %s121
      %p132 = scmp.eq.s32.totalorder %s28, 0
      %p133 = por %p131, %p132
      %p134 = scmp.ne.s32.totalorder %s120, %s121
      %p135 = scmp.eq.s32.totalorder %s29, 1
      %p136 = por %p134, %p135
      %p138 = scmp.ne.s32.totalorder %s121, %s137
      %p139 = scmp.eq.s32.totalorder %s29, 0
      %p140 = por %p138, %p139
      %s142 = sadd.s32 %s141, 1
      %p145 = scmp.eq.s32.totalorder %s23, 1
      %p146 = scmp.ne.s32.totalorder %s141, %s143
      %p147 = scmp.eq.s32.totalorder %s23, 0
      %p148 = por %p146, %p147
      %p149 = scmp.ne.s32.totalorder %s141, %s143
      %p150 = scmp.eq.s32.totalorder %s28, 1
      %p151 = por %p149, %p150
      %p152 = scmp.ne.s32.totalorder %s143, %s144
      %p153 = scmp.eq.s32.totalorder %s28, 0
      %p154 = por %p152, %p153
      %p155 = scmp.ne.s32.totalorder %s143, %s144
      %p156 = scmp.eq.s32.totalorder %s29, 1
      %p157 = por %p155, %p156
      %p159 = scmp.ne.s32.totalorder %s144, %s158
      %p160 = scmp.eq.s32.totalorder %s29, 0
      %p161 = por %p159, %p160
      %s163 = sadd.s32 %s162, 1
      %p166 = scmp.eq.s32.totalorder %s23, 1
      %p167 = scmp.ne.s32.totalorder %s162, %s164
      %p168 = scmp.eq.s32.totalorder %s23, 0
      %p169 = por %p167, %p168
      %p170 = scmp.ne.s32.totalorder %s162, %s164
      %p171 = scmp.eq.s32.totalorder %s28, 1
      %p172 = por %p170, %p171
      %p173 = scmp.ne.s32.totalorder %s164, %s165
      %p174 = scmp.eq.s32.totalorder %s28, 0
      %p175 = por %p173, %p174
      %p176 = scmp.ne.s32.totalorder %s164, %s165
      %p177 = scmp.eq.s32.totalorder %s29, 1
      %p178 = por %p176, %p177
      %p180 = scmp.ne.s32.totalorder %s165, %s179
      %p181 = scmp.eq.s32.totalorder %s29, 0
      %p182 = por %p180, %p181
      %s184 = sadd.s32 %s183, 1
      %p187 = scmp.eq.s32.totalorder %s23, 1
      %p188 = scmp.ne.s32.totalorder %s183, %s185
      %p189 = scmp.eq.s32.totalorder %s23, 0
      %p190 = por %p188, %p189
      %p191 = scmp.ne.s32.totalorder %s183, %s185
      %p192 = scmp.eq.s32.totalorder %s28, 1
      %p193 = por %p191, %p192
      %p194 = scmp.ne.s32.totalorder %s185, %s186
      %p195 = scmp.eq.s32.totalorder %s28, 0
      %p196 = por %p194, %p195
      %p197 = scmp.ne.s32.totalorder %s185, %s186
      %p198 = scmp.eq.s32.totalorder %s29, 1
      %p199 = por %p197, %p198
      %p201 = scmp.ne.s32.totalorder %s186, %s200
      %p202 = scmp.eq.s32.totalorder %s29, 0
      %p203 = por %p201, %p202
      %s205 = sadd.s32 %s204, 1
      %p208 = scmp.eq.s32.totalorder %s23, 1
      %p209 = scmp.ne.s32.totalorder %s204, %s206
      %p210 = scmp.eq.s32.totalorder %s23, 0
      %p211 = por %p209, %p210
      %p212 = scmp.ne.s32.totalorder %s204, %s206
      %p213 = scmp.eq.s32.totalorder %s28, 1
      %p214 = por %p212, %p213
      %p215 = scmp.ne.s32.totalorder %s206, %s207
      %p216 = scmp.eq.s32.totalorder %s28, 0
      %p217 = por %p215, %p216
      %p218 = scmp.ne.s32.totalorder %s206, %s207
      %p219 = scmp.eq.s32.totalorder %s29, 1
      %p220 = por %p218, %p219
      %p222 = scmp.ne.s32.totalorder %s207, %s221
      %p223 = scmp.eq.s32.totalorder %s29, 0
      %p224 = por %p222, %p223
      %s225 = ssub.s32 %s23, %s30
      %p226 = scmp.eq.s32.totalorder %s225, 0
      %s228 = sadd.s32 %s227, 1
      %s229 = scalar_select %p226, %s227, %s228
      %p232 = pneg %p226
      %p233 = scmp.eq.s32.totalorder %s23, 1
      %p234 = por %p232, %p233
      %p235 = scmp.ne.s32.totalorder %s227, %s230
      %p236 = scmp.eq.s32.totalorder %s23, 0
      %p237 = por %p235, %p236
      %p238 = scmp.ne.s32.totalorder %s227, %s230
      %p239 = scmp.eq.s32.totalorder %s28, 1
      %p240 = por %p238, %p239
      %p241 = scmp.ne.s32.totalorder %s230, %s231
      %p242 = scmp.eq.s32.totalorder %s28, 0
      %p243 = por %p241, %p242
      %p244 = scmp.ne.s32.totalorder %s230, %s231
      %p245 = scmp.eq.s32.totalorder %s29, 1
      %p246 = por %p244, %p245
      %p248 = scmp.ne.s32.totalorder %s231, %s247
      %p249 = scmp.eq.s32.totalorder %s29, 0
      %p250 = por %p248, %p249
      %p251 = scmp.le.s32.totalorder 1, %s23
      %p252 = scmp.lt.s32.totalorder %s23, 3
      %p253 = pnand %p251, %p252
      %p254 = pneg %p253
      // Predicated region
      $region9: #{tpu_custom_call.1} parent=5 // pred_check
        _
      $region10: #{tpu_custom_call.1} parent=5 // pred_check_branch
        %256 = sbr.rel (%p253) target = $region12
      $region11: #{tpu_custom_call.1} parent=5 // pred_region
        %s257 = ssub.s32 %s23, 1
        // Predicated region
        $region13: #{tpu_custom_call.1} parent=11 // pred_check
          %p258 = pneg %p44
        $region14: #{tpu_custom_call.1} parent=11 // pred_check_branch
          %260 = sbr.rel (%p258) target = $region16
        $region15: #{tpu_custom_call.1} parent=11 // pred_region
          %s262 = ssub.s32 64, 64
          %263 = vsyncadd [#allocation5], %s262
          %s265 = sshll.u32 %s0, 4
          %s266 = int_to_ptr.vmem [resolvable:$true] %s265
          %268 = dma.vmem_to_smem %s266, 64, [#allocation2], [#allocation5]
        $region16: #{tpu_custom_call.1} parent=11 // pred_fallthru
          _
        // Predicated region
        $region17: #{tpu_custom_call.1} parent=11 // pred_check
          %p269 = pneg %p65
        $region18: #{tpu_custom_call.1} parent=11 // pred_check_branch
          %271 = sbr.rel (%p269) target = $region20
        $region19: #{tpu_custom_call.1} parent=11 // pred_region
          %s273 = ssub.s32 64, 64
          %274 = vsyncadd [#allocation7], %s273
          %s276 = sshll.u32 %s1, 4
          %s277 = int_to_ptr.vmem [resolvable:$true] %s276
          %279 = dma.vmem_to_smem %s277, 64, [#allocation6], [#allocation7]
        $region20: #{tpu_custom_call.1} parent=11 // pred_fallthru
          _
        // Predicated region
        $region21: #{tpu_custom_call.1} parent=11 // pred_check
          %p280 = pneg %p86
        $region22: #{tpu_custom_call.1} parent=11 // pred_check_branch
          %282 = sbr.rel (%p280) target = $region24
        $region23: #{tpu_custom_call.1} parent=11 // pred_region
          %s284 = ssub.s32 64, 64
          %285 = vsyncadd [#allocation7], %s284
          %s287 = sshll.u32 %s2, 4
          %s288 = int_to_ptr.vmem [resolvable:$true] %s287
          %290 = dma.vmem_to_smem %s288, 64, [#allocation8], [#allocation7]
        $region24: #{tpu_custom_call.1} parent=11 // pred_fallthru
          _
        // Predicated region
        $region25: #{tpu_custom_call.1} parent=11 // pred_check
          %p291 = pneg %p107
        $region26: #{tpu_custom_call.1} parent=11 // pred_check_branch
          %293 = sbr.rel (%p291) target = $region28
        $region27: #{tpu_custom_call.1} parent=11 // pred_region
          _
        $region28: #{tpu_custom_call.1} parent=11 // pred_fallthru
          _
        // Predicated region
        $region29: #{tpu_custom_call.1} parent=11 // pred_check
          %p294 = pneg %p154
        $region30: #{tpu_custom_call.1} parent=11 // pred_check_branch
          %296 = sbr.rel (%p294) target = $region32
        $region31: #{tpu_custom_call.1} parent=11 // pred_region
          _
        $region32: #{tpu_custom_call.1} parent=11 // pred_fallthru
          _
        // Predicated region
        $region33: #{tpu_custom_call.1} parent=11 // pred_check
          %p297 = pneg %p175
        $region34: #{tpu_custom_call.1} parent=11 // pred_check_branch
          %299 = sbr.rel (%p297) target = $region36
        $region35: #{tpu_custom_call.1} parent=11 // pred_region
          _
        $region36: #{tpu_custom_call.1} parent=11 // pred_fallthru
          _
        // Predicated region
        $region37: #{tpu_custom_call.1} parent=11 // pred_check
          %p300 = pneg %p196
        $region38: #{tpu_custom_call.1} parent=11 // pred_check_branch
          %302 = sbr.rel (%p300) target = $region40
        $region39: #{tpu_custom_call.1} parent=11 // pred_region
          _
        $region40: #{tpu_custom_call.1} parent=11 // pred_fallthru
          _
        // Predicated region
        $region41: #{tpu_custom_call.1} parent=11 // pred_check
          %p303 = pneg %p217
        $region42: #{tpu_custom_call.1} parent=11 // pred_check_branch
          %305 = sbr.rel (%p303) target = $region44
        $region43: #{tpu_custom_call.1} parent=11 // pred_region
          _
        $region44: #{tpu_custom_call.1} parent=11 // pred_fallthru
          _
      $region12: #{tpu_custom_call.1} parent=5 // pred_fallthru
        _
      %p306 = scmp.lt.s32.totalorder %s23, 2
      // Predicated region
      $region45: #{tpu_custom_call.1} parent=5 // pred_check
        %p307 = pneg %p306
      $region46: #{tpu_custom_call.1} parent=5 // pred_check_branch
        %309 = sbr.rel (%p307) target = $region48
      $region47: #{tpu_custom_call.1} parent=5 // pred_region
        // Predicated region
        $region49: #{tpu_custom_call.1} parent=47 // pred_check
          %p310 = pneg %p127
        $region50: #{tpu_custom_call.1} parent=47 // pred_check_branch
          %312 = sbr.rel (%p310) target = $region52
        $region51: #{tpu_custom_call.1} parent=47 // pred_region
          %s313 = sand.u32 %s117, 1
          %s314 = scalar_lea.sflag [#allocation3], %s313
          %s315 = sand.u32 %s117, 1
          %s316 = smul.addr %s315, 64
          %s317 = scalar_lea.vmem [#allocation9], %s316
          %s319 = ssub.s32 1024, 1024
          %320 = vsyncadd %s314, %s319
          %s321 = smul.addr %s23, 8
          %s322 = smul.addr %s321, 128
          %s323 = scalar_lea.hbm %s4, %s322
          %s324 = sshll.u32 %s317, 4
          %s325 = int_to_ptr.vmem [resolvable:$true] %s324
          %330 = dma.hbm_to_vmem [thread:$0]  %s323, 1024, %s325, %s314, 128, 128, 8
        $region52: #{tpu_custom_call.1} parent=47 // pred_fallthru
          _
      $region48: #{tpu_custom_call.1} parent=5 // pred_fallthru
        _
      %p331 = scmp.le.s32.totalorder 1, %s23
      %p332 = scmp.lt.s32.totalorder %s23, 3
      %p333 = pnand %p331, %p332
      %p334 = pneg %p333
      // Predicated region
      $region53: #{tpu_custom_call.1} parent=5 // pred_check
        _
      $region54: #{tpu_custom_call.1} parent=5 // pred_check_branch
        %336 = sbr.rel (%p333) target = $region56
      $region55: #{tpu_custom_call.1} parent=5 // pred_region
        %s337 = ssub.s32 %s23, 1
        // Predicated region
        $region57: #{tpu_custom_call.1} parent=55 // pred_check
          %p338 = pneg %p44
        $region58: #{tpu_custom_call.1} parent=55 // pred_check_branch
          %340 = sbr.rel (%p338) target = $region60
        $region59: #{tpu_custom_call.1} parent=55 // pred_region
          %341 = dma.done [#allocation5], 64
        $region60: #{tpu_custom_call.1} parent=55 // pred_fallthru
          _
        // Predicated region
        $region61: #{tpu_custom_call.1} parent=55 // pred_check
          %p342 = pneg %p65
        $region62: #{tpu_custom_call.1} parent=55 // pred_check_branch
          %344 = sbr.rel (%p342) target = $region64
        $region63: #{tpu_custom_call.1} parent=55 // pred_region
          %345 = dma.done [#allocation7], 64
        $region64: #{tpu_custom_call.1} parent=55 // pred_fallthru
          _
        // Predicated region
        $region65: #{tpu_custom_call.1} parent=55 // pred_check
          %p346 = pneg %p86
        $region66: #{tpu_custom_call.1} parent=55 // pred_check_branch
          %348 = sbr.rel (%p346) target = $region68
        $region67: #{tpu_custom_call.1} parent=55 // pred_region
          %349 = dma.done [#allocation7], 64
        $region68: #{tpu_custom_call.1} parent=55 // pred_fallthru
          _
        %s350 = sand.u32 %s120, 1
        %s351 = scalar_lea.sflag [#allocation3], %s350
        %s352 = sand.u32 %s120, 1
        %s353 = smul.addr %s352, 64
        %s354 = scalar_lea.vmem [#allocation9], %s353
        // Predicated region
        $region69: #{tpu_custom_call.1} parent=55 // pred_check
          %p355 = pneg %p133
        $region70: #{tpu_custom_call.1} parent=55 // pred_check_branch
          %357 = sbr.rel (%p355) target = $region72
        $region71: #{tpu_custom_call.1} parent=55 // pred_region
          %358 = dma.done %s351, 1024
        $region72: #{tpu_custom_call.1} parent=55 // pred_fallthru
          _
        %359 = sfence
        %p360 = pneg %p44
        %p361 = pneg %p41
        %p362 = pneg %p65
        %p363 = pneg %p62
        %p364 = pneg %p86
        %p365 = pneg %p83
        %p366 = pneg %p107
        %p367 = pneg %p104
        %s368 = sand.u32 %s120, 1
        %s369 = scalar_lea.sflag [#allocation3], %s368
        %s370 = sand.u32 %s120, 1
        %s371 = smul.addr %s370, 64
        %s372 = scalar_lea.vmem [#allocation9], %s371
        %p373 = pneg %p133
        %p374 = pneg %p130
        %p375 = pneg %p154
        %p376 = pneg %p151
        %p377 = pneg %p175
        %p378 = pneg %p172
        %p379 = pneg %p196
        %p380 = pneg %p193
        %p381 = pneg %p217
        %p382 = pneg %p214
        %p383 = pneg %p243
        %p384 = pneg %p240
        %s385 = sand.u32 %s230, 1
        %s386 = scalar_lea.sflag [#allocation4], %s385
        %s387 = sand.u32 %s230, 1
        %s388 = smul.addr %s387, 16
        %s389 = scalar_lea.vmem [#allocation10], %s388
        %v391 = vld [vmem:[%s3] sm:$0xf]
        %s392 = sld [smem:[#allocation2]]
        %v393 = vld [vmem:[%s354] sm:$0xff]
        %v394 = vld [vmem:[%s354 + $0x8] sm:$0xff]
        %v395 = vstv %s392
        %v396 = vmul.f32 %v395, %v393
        %v397 = vmul.f32 %v395, %v394
        %s398 = sld [smem:[#allocation2 + $0x1]]
        %s399 = scalar_lea.vmem %s354, 16 [#allocation9]
        %v400 = vld [vmem:[%s399] sm:$0xff]
        %v401 = vld [vmem:[%s399 + $0x8] sm:$0xff]
        %v402 = vstv %s398
        %v403 = vmul.f32 %v402, %v400
        %v404 = vmul.f32 %v402, %v401
        %v405 = vadd.f32 %v396, %v403
        %v406 = vadd.f32 %v397, %v404
        %s407 = sld [smem:[#allocation2 + $0x2]]
        %s408 = scalar_lea.vmem %s354, 32 [#allocation9]
        %v409 = vld [vmem:[%s408] sm:$0xff]
        %v410 = vld [vmem:[%s408 + $0x8] sm:$0xff]
        %v411 = vstv %s407
        %v412 = vmul.f32 %v411, %v409
        %v413 = vmul.f32 %v411, %v410
        %v414 = vadd.f32 %v405, %v412
        %v415 = vadd.f32 %v406, %v413
        %s416 = sld [smem:[#allocation2 + $0x3]]
        %s417 = scalar_lea.vmem %s354, 48 [#allocation9]
        %v418 = vld [vmem:[%s417] sm:$0xff]
        %v419 = vld [vmem:[%s417 + $0x8] sm:$0xff]
        %v420 = vstv %s416
        %v421 = vmul.f32 %v420, %v418
        %v422 = vmul.f32 %v420, %v419
        %v423 = vadd.f32 %v414, %v421
        %v424 = vadd.f32 %v415, %v422
        %vm425 = vcmp.ge.f32.partialorder %v423, 0.0
        %vm426 = vcmp.ge.f32.partialorder %v424, 0.0
        %v427 = vmul.f32 %v423, 0.05
        %v428 = vmul.f32 %v424, 0.05
        %v429 = vsel %vm425, %v423, %v427
        %v430 = vsel %vm426, %v424, %v428
        %s431 = sld [smem:[#allocation2 + $0x80]]
        %v432 = vstv %s431
        %v433 = vmul.f32 %v432, %v393
        %v434 = vmul.f32 %v432, %v394
        %s435 = sld [smem:[#allocation2 + $0x81]]
        %v436 = vstv %s435
        %v437 = vmul.f32 %v436, %v400
        %v438 = vmul.f32 %v436, %v401
        %v439 = vadd.f32 %v433, %v437
        %v440 = vadd.f32 %v434, %v438
        %s441 = sld [smem:[#allocation2 + $0x82]]
        %v442 = vstv %s441
        %v443 = vmul.f32 %v442, %v409
        %v444 = vmul.f32 %v442, %v410
        %v445 = vadd.f32 %v439, %v443
        %v446 = vadd.f32 %v440, %v444
        %s447 = sld [smem:[#allocation2 + $0x83]]
        %v448 = vstv %s447
        %v449 = vmul.f32 %v448, %v418
        %v450 = vmul.f32 %v448, %v419
        %v451 = vadd.f32 %v445, %v449
        %v452 = vadd.f32 %v446, %v450
        %vm453 = vcmp.ge.f32.partialorder %v451, 0.0
        %vm454 = vcmp.ge.f32.partialorder %v452, 0.0
        %v455 = vmul.f32 %v451, 0.05
        %v456 = vmul.f32 %v452, 0.05
        %v457 = vsel %vm453, %v451, %v455
        %v458 = vsel %vm454, %v452, %v456
        %s459 = sld [smem:[#allocation2 + $0x100]]
        %v460 = vstv %s459
        %v461 = vmul.f32 %v460, %v393
        %v462 = vmul.f32 %v460, %v394
        %s463 = sld [smem:[#allocation2 + $0x101]]
        %v464 = vstv %s463
        %v465 = vmul.f32 %v464, %v400
        %v466 = vmul.f32 %v464, %v401
        %v467 = vadd.f32 %v461, %v465
        %v468 = vadd.f32 %v462, %v466
        %s469 = sld [smem:[#allocation2 + $0x102]]
        %v470 = vstv %s469
        %v471 = vmul.f32 %v470, %v409
        %v472 = vmul.f32 %v470, %v410
        %v473 = vadd.f32 %v467, %v471
        %v474 = vadd.f32 %v468, %v472
        %s475 = sld [smem:[#allocation2 + $0x103]]
        %v476 = vstv %s475
        %v477 = vmul.f32 %v476, %v418
        %v478 = vmul.f32 %v476, %v419
        %v479 = vadd.f32 %v473, %v477
        %v480 = vadd.f32 %v474, %v478
        %vm481 = vcmp.ge.f32.partialorder %v479, 0.0
        %vm482 = vcmp.ge.f32.partialorder %v480, 0.0
        %v483 = vmul.f32 %v479, 0.05
        %v484 = vmul.f32 %v480, 0.05
        %v485 = vsel %vm481, %v479, %v483
        %v486 = vsel %vm482, %v480, %v484
        %s487 = sld [smem:[#allocation2 + $0x180]]
        %v488 = vstv %s487
        %v489 = vmul.f32 %v488, %v393
        %v490 = vmul.f32 %v488, %v394
        %s491 = sld [smem:[#allocation2 + $0x181]]
        %v492 = vstv %s491
        %v493 = vmul.f32 %v492, %v400
        %v494 = vmul.f32 %v492, %v401
        %v495 = vadd.f32 %v489, %v493
        %v496 = vadd.f32 %v490, %v494
        %s497 = sld [smem:[#allocation2 + $0x182]]
        %v498 = vstv %s497
        %v499 = vmul.f32 %v498, %v409
        %v500 = vmul.f32 %v498, %v410
        %v501 = vadd.f32 %v495, %v499
        %v502 = vadd.f32 %v496, %v500
        %s503 = sld [smem:[#allocation2 + $0x183]]
        %v504 = vstv %s503
        %v505 = vmul.f32 %v504, %v418
        %v506 = vmul.f32 %v504, %v419
        %v507 = vadd.f32 %v501, %v505
        %v508 = vadd.f32 %v502, %v506
        %vm509 = vcmp.ge.f32.partialorder %v507, 0.0
        %vm510 = vcmp.ge.f32.partialorder %v508, 0.0
        %v511 = vmul.f32 %v507, 0.05
        %v512 = vmul.f32 %v508, 0.05
        %v513 = vsel %vm509, %v507, %v511
        %v514 = vsel %vm510, %v508, %v512
        %v515 = vpack.c.bf16 %v430, %v429
        %v516 = vpack.c.bf16 %v458, %v457
        %v517 = vld [vmem:[%s5] sm:$0xf]
        %v518 = vld [vmem:[%s5 + $0x4] sm:$0xf]
        %v521 = vunpack.c.l.b16 %v517
        %v522 = vunpack.c.l.b16 %v518
        %v523 = vpack.c.b16 %v522, %v521
        %vm525 = vcmask 130048
        %v527 = vsel %vm525, %v515, 0
        %v530 = vsel %vm525, %v516, 0
        %532 = vmatprep.subr.bf16.mxu0 0
        %533 = vmatpush1.bf16.msra.mxu0 %v523
        %534 = vmatprep.subr.bf16.mxu0 0
        %535 = vmatpush1.bf16.msra.mxu0 0
        %536 = vmatprep.subr.bf16.mxu0 0
        %537 = vmatpush1.bf16.msra.mxu0 0
        %538 = vmatprep.subr.bf16.mxu0 0
        %539 = vmatpush1.bf16.msra.mxu0 0
        %540 = vmatprep.subr.bf16.mxu0 0
        %541 = vmatpush1.bf16.msra.mxu0 0
        %542 = vmatprep.subr.bf16.mxu0 0
        %543 = vmatpush1.bf16.msra.mxu0 0
        %544 = vmatprep.subr.bf16.mxu0 0
        %545 = vmatpush1.bf16.msra.mxu0 0
        %546 = vmatprep.subr.bf16.mxu0 0
        %547 = vmatpush1.bf16.msra.mxu0 0
        %548 = vmatprep.subr.bf16.mxu0 0
        %549 = vmatpush1.bf16.msra.mxu0 0
        %550 = vmatprep.subr.bf16.mxu0 0
        %551 = vmatpush1.bf16.msra.mxu0 0
        %552 = vmatprep.subr.bf16.mxu0 0
        %553 = vmatpush1.bf16.msra.mxu0 0
        %554 = vmatprep.subr.bf16.mxu0 0
        %555 = vmatpush1.bf16.msra.mxu0 0
        %556 = vmatprep.subr.bf16.mxu0 0
        %557 = vmatpush1.bf16.msra.mxu0 0
        %558 = vmatprep.subr.bf16.mxu0 0
        %559 = vmatpush1.bf16.msra.mxu0 0
        %560 = vmatprep.subr.bf16.mxu0 0
        %561 = vmatpush1.bf16.msra.mxu0 0
        %562 = vmatprep.subr.bf16.mxu0 0
        %563 = vmatpush1.bf16.msra.mxu0 0
        %564 = vmatprep.mubr.bf16.mxu0 0
        %565 = vmatmul.mubr.bf16.gmra.mrb[0].mxu0 %v527
        %v566 = vpop.f32.mrb[0].mxu0
        %v567 = vadd.f32 0.0, %v566
        %v568 = vpop.f32.mrb[0].mxu0
        %v569 = vpop.f32.mrb[0].mxu0
        %v570 = vadd.f32 0.0, %v569
        %v571 = vpop.f32.mrb[0].mxu0
        %572 = vmatprep.mubr.bf16.mxu0 0
        %573 = vmatmul.mubr.bf16.gmra.mrb[0].mxu0 %v530
        %v574 = vpop.f32.mrb[0].mxu0
        %v575 = vadd.f32 0.0, %v574
        %v576 = vpop.f32.mrb[0].mxu0
        %v577 = vpop.f32.mrb[0].mxu0
        %v578 = vadd.f32 0.0, %v577
        %v579 = vpop.f32.mrb[0].mxu0
        %580 = vdwg.mxu0
        %s581 = sld [smem:[#allocation6]]
        %v582 = vstv %s581
        %v583 = vmul.f32 %v582, %v567
        %v584 = vmul.f32 %v582, %v570
        %s585 = sld [smem:[#allocation6 + $0x100]]
        %v586 = vstv %s585
        %v587 = vmul.f32 %v586, %v567
        %v588 = vmul.f32 %v586, %v570
        %s589 = sld [smem:[#allocation6 + $0x1]]
        %v590 = vstv %s589
        %v591 = vmul.f32 %v590, %v575
        %v592 = vmul.f32 %v590, %v578
        %v593 = vadd.f32 %v583, %v591
        %v594 = vadd.f32 %v584, %v592
        %s595 = sld [smem:[#allocation6 + $0x101]]
        %v596 = vstv %s595
        %v597 = vmul.f32 %v596, %v575
        %v598 = vmul.f32 %v596, %v578
        %v599 = vadd.f32 %v587, %v597
        %v600 = vadd.f32 %v588, %v598
        %s601 = sld [smem:[#allocation6 + $0x2]]
        %v602 = vstv %s601
        %v603 = vmul.f32 %v602, %v567
        %v604 = vmul.f32 %v602, %v570
        %607 = vrot.lane.b32.xlu0 %v603, 119
        %v608 = vpop.permute.xlu0 %607
        %609 = vrot.lane.b32.xlu0 %v604, 119
        %v610 = vpop.permute.xlu0 %609
        %v613 = vadd.f32 %v593, %v608
        %v614 = vadd.f32 %v594, %v610
        %s615 = sld [smem:[#allocation6 + $0x102]]
        %v616 = vstv %s615
        %v617 = vmul.f32 %v616, %v567
        %v618 = vmul.f32 %v616, %v570
        %621 = vrot.lane.b32.xlu0 %v617, 119
        %v622 = vpop.permute.xlu0 %621
        %623 = vrot.lane.b32.xlu0 %v618, 119
        %v624 = vpop.permute.xlu0 %623
        %v627 = vadd.f32 %v599, %v622
        %v628 = vadd.f32 %v600, %v624
        %s629 = sld [smem:[#allocation6 + $0x3]]
        %v630 = vstv %s629
        %v631 = vmul.f32 %v630, %v575
        %v632 = vmul.f32 %v630, %v578
        %635 = vrot.lane.b32.xlu0 %v631, 119
        %v636 = vpop.permute.xlu0 %635
        %637 = vrot.lane.b32.xlu0 %v632, 119
        %v638 = vpop.permute.xlu0 %637
        %v641 = vadd.f32 %v613, %v636
        %v642 = vadd.f32 %v614, %v638
        %s643 = sld [smem:[#allocation6 + $0x103]]
        %v644 = vstv %s643
        %v645 = vmul.f32 %v644, %v575
        %v646 = vmul.f32 %v644, %v578
        %649 = vrot.lane.b32.xlu0 %v645, 119
        %v650 = vpop.permute.xlu0 %649
        %651 = vrot.lane.b32.xlu0 %v646, 119
        %v652 = vpop.permute.xlu0 %651
        %v655 = vadd.f32 %v627, %v650
        %v656 = vadd.f32 %v628, %v652
        %s657 = sld [smem:[#allocation6 + $0x80]]
        %v658 = vstv %s657
        %v659 = vmul.f32 %v658, %v567
        %v660 = vmul.f32 %v658, %v570
        %s661 = sld [smem:[#allocation6 + $0x180]]
        %v662 = vstv %s661
        %v663 = vmul.f32 %v662, %v567
        %v664 = vmul.f32 %v662, %v570
        %s665 = sld [smem:[#allocation6 + $0x81]]
        %v666 = vstv %s665
        %v667 = vmul.f32 %v666, %v575
        %v668 = vmul.f32 %v666, %v578
        %v669 = vadd.f32 %v659, %v667
        %v670 = vadd.f32 %v660, %v668
        %s671 = sld [smem:[#allocation6 + $0x181]]
        %v672 = vstv %s671
        %v673 = vmul.f32 %v672, %v575
        %v674 = vmul.f32 %v672, %v578
        %v675 = vadd.f32 %v663, %v673
        %v676 = vadd.f32 %v664, %v674
        %s677 = sld [smem:[#allocation6 + $0x82]]
        %v678 = vstv %s677
        %v679 = vmul.f32 %v678, %v567
        %v680 = vmul.f32 %v678, %v570
        %683 = vrot.lane.b32.xlu0 %v679, 119
        %v684 = vpop.permute.xlu0 %683
        %685 = vrot.lane.b32.xlu0 %v680, 119
        %v686 = vpop.permute.xlu0 %685
        %v689 = vadd.f32 %v669, %v684
        %v690 = vadd.f32 %v670, %v686
        %s691 = sld [smem:[#allocation6 + $0x182]]
        %v692 = vstv %s691
        %v693 = vmul.f32 %v692, %v567
        %v694 = vmul.f32 %v692, %v570
        %697 = vrot.lane.b32.xlu0 %v693, 119
        %v698 = vpop.permute.xlu0 %697
        %699 = vrot.lane.b32.xlu0 %v694, 119
        %v700 = vpop.permute.xlu0 %699
        %v703 = vadd.f32 %v675, %v698
        %v704 = vadd.f32 %v676, %v700
        %s705 = sld [smem:[#allocation6 + $0x83]]
        %v706 = vstv %s705
        %v707 = vmul.f32 %v706, %v575
        %v708 = vmul.f32 %v706, %v578
        %711 = vrot.lane.b32.xlu0 %v707, 119
        %v712 = vpop.permute.xlu0 %711
        %713 = vrot.lane.b32.xlu0 %v708, 119
        %v714 = vpop.permute.xlu0 %713
        %v717 = vadd.f32 %v689, %v712
        %v718 = vadd.f32 %v690, %v714
        %s719 = sld [smem:[#allocation6 + $0x183]]
        %v720 = vstv %s719
        %v721 = vmul.f32 %v720, %v575
        %v722 = vmul.f32 %v720, %v578
        %725 = vrot.lane.b32.xlu0 %v721, 119
        %v726 = vpop.permute.xlu0 %725
        %727 = vrot.lane.b32.xlu0 %v722, 119
        %v728 = vpop.permute.xlu0 %727
        %v731 = vadd.f32 %v703, %v726
        %v732 = vadd.f32 %v704, %v728
        %737 = vrot.lane.b32.xlu0 %v655, 9
        %v738 = vpop.permute.xlu0 %737
        %739 = vrot.lane.b32.xlu0 %v656, 9
        %v740 = vpop.permute.xlu0 %739
        %741 = vrot.lane.b32.xlu0 %v731, 9
        %v742 = vpop.permute.xlu0 %741
        %743 = vrot.lane.b32.xlu0 %v732, 9
        %v744 = vpop.permute.xlu0 %743
        %vm749 = vcmask 72704
        %v750 = vsel %vm749, %v641, %v738
        %v751 = vsel %vm749, %v642, %v740
        %v752 = vsel %vm749, %v717, %v742
        %v753 = vsel %vm749, %v718, %v744
        %vm754 = vcmp.ge.f32.partialorder %v750, 0.0
        %vm755 = vcmp.ge.f32.partialorder %v751, 0.0
        %vm756 = vcmp.ge.f32.partialorder %v752, 0.0
        %vm757 = vcmp.ge.f32.partialorder %v753, 0.0
        %v758 = vmul.f32 %v750, 0.05
        %v759 = vmul.f32 %v751, 0.05
        %v760 = vmul.f32 %v752, 0.05
        %v761 = vmul.f32 %v753, 0.05
        %v762 = vsel %vm754, %v750, %v758
        %v763 = vsel %vm755, %v751, %v759
        %v764 = vsel %vm756, %v752, %v760
        %v765 = vsel %vm757, %v753, %v761
        %v766 = vpack.c.bf16 %v763, %v762
        %v767 = vpack.c.bf16 %v765, %v764
        %v768 = vld [vmem:[%s6] sm:$0xf]
        %v769 = vld [vmem:[%s6 + $0x4] sm:$0xf]
        %v770 = vld [vmem:[%s6 + $0x8] sm:$0x1]
        %v774 = vunpack.c.l.b16 %v768
        %v775 = vunpack.c.l.b16 %v769
        %v776 = vunpack.c.l.b16 %v770
        %v777 = vpack.c.b16 %v775, %v774
        %v778 = vpack.c.b16 %v776, %v776
        %vm780 = vcmask 146432
        %v782 = vsel %vm780, %v766, 0
        %v785 = vsel %vm780, %v767, 0
        %vm787 = vcmask 1040384
        %v789 = vsel %vm787, %v778, 0
        %791 = vmatprep.subr.bf16.mxu0 0
        %792 = vmatpush1.bf16.msra.mxu0 %v777
        %793 = vmatprep.subr.bf16.mxu0 0
        %794 = vmatpush1.bf16.msra.mxu0 %v789
        %795 = vmatprep.subr.bf16.mxu0 0
        %796 = vmatpush1.bf16.msra.mxu0 0
        %797 = vmatprep.subr.bf16.mxu0 0
        %798 = vmatpush1.bf16.msra.mxu0 0
        %799 = vmatprep.subr.bf16.mxu0 0
        %800 = vmatpush1.bf16.msra.mxu0 0
        %801 = vmatprep.subr.bf16.mxu0 0
        %802 = vmatpush1.bf16.msra.mxu0 0
        %803 = vmatprep.subr.bf16.mxu0 0
        %804 = vmatpush1.bf16.msra.mxu0 0
        %805 = vmatprep.subr.bf16.mxu0 0
        %806 = vmatpush1.bf16.msra.mxu0 0
        %807 = vmatprep.subr.bf16.mxu0 0
        %808 = vmatpush1.bf16.msra.mxu0 0
        %809 = vmatprep.subr.bf16.mxu0 0
        %810 = vmatpush1.bf16.msra.mxu0 0
        %811 = vmatprep.subr.bf16.mxu0 0
        %812 = vmatpush1.bf16.msra.mxu0 0
        %813 = vmatprep.subr.bf16.mxu0 0
        %814 = vmatpush1.bf16.msra.mxu0 0
        %815 = vmatprep.subr.bf16.mxu0 0
        %816 = vmatpush1.bf16.msra.mxu0 0
        %817 = vmatprep.subr.bf16.mxu0 0
        %818 = vmatpush1.bf16.msra.mxu0 0
        %819 = vmatprep.subr.bf16.mxu0 0
        %820 = vmatpush1.bf16.msra.mxu0 0
        %821 = vmatprep.subr.bf16.mxu0 0
        %822 = vmatpush1.bf16.msra.mxu0 0
        %823 = vmatprep.mubr.bf16.mxu0 0
        %824 = vmatmul.mubr.bf16.gmra.mrb[0].mxu0 %v782
        %v825 = vpop.f32.mrb[0].mxu0
        %v826 = vadd.f32 0.0, %v825
        %v827 = vpop.f32.mrb[0].mxu0
        %v828 = vpop.f32.mrb[0].mxu0
        %v829 = vadd.f32 0.0, %v828
        %v830 = vpop.f32.mrb[0].mxu0
        %831 = vmatprep.mubr.bf16.mxu0 0
        %832 = vmatmul.mubr.bf16.gmra.mrb[0].mxu0 %v785
        %v833 = vpop.f32.mrb[0].mxu0
        %v834 = vadd.f32 0.0, %v833
        %v835 = vpop.f32.mrb[0].mxu0
        %v836 = vpop.f32.mrb[0].mxu0
        %v837 = vadd.f32 0.0, %v836
        %v838 = vpop.f32.mrb[0].mxu0
        %839 = vdwg.mxu0
        %v840 = vadd.f32 %v429, %v826
        %v841 = vadd.f32 %v430, %v829
        %844 = vrot.lane.b32.xlu0 %v840, 16
        %v845 = vpop.permute.xlu0 %844
        %846 = vrot.lane.b32.xlu0 %v841, 16
        %v847 = vpop.permute.xlu0 %846
        %850 = vrot.lane.b32.xlu0 %v840, 32
        %v851 = vpop.permute.xlu0 %850
        %852 = vrot.lane.b32.xlu0 %v841, 32
        %v853 = vpop.permute.xlu0 %852
        %856 = vrot.lane.b32.xlu0 %v840, 48
        %v857 = vpop.permute.xlu0 %856
        %858 = vrot.lane.b32.xlu0 %v841, 48
        %v859 = vpop.permute.xlu0 %858
        %862 = vrot.lane.b32.xlu0 %v840, 64
        %v863 = vpop.permute.xlu0 %862
        %864 = vrot.lane.b32.xlu0 %v841, 64
        %v865 = vpop.permute.xlu0 %864
        %868 = vrot.lane.b32.xlu0 %v840, 80
        %v869 = vpop.permute.xlu0 %868
        %870 = vrot.lane.b32.xlu0 %v841, 80
        %v871 = vpop.permute.xlu0 %870
        %874 = vrot.lane.b32.xlu0 %v840, 96
        %v875 = vpop.permute.xlu0 %874
        %876 = vrot.lane.b32.xlu0 %v841, 96
        %v877 = vpop.permute.xlu0 %876
        %880 = vrot.lane.b32.xlu0 %v840, 112
        %v881 = vpop.permute.xlu0 %880
        %882 = vrot.lane.b32.xlu0 %v841, 112
        %v883 = vpop.permute.xlu0 %882
        %v886 = vsel %vm525, %v840, %v845
        %v887 = vsel %vm525, %v841, %v847
        %vm888 = vcmask 261120
        %v889 = vsel %vm888, %v886, %v851
        %v890 = vsel %vm888, %v887, %v853
        %vm891 = vcmask 392192
        %v892 = vsel %vm891, %v889, %v857
        %v893 = vsel %vm891, %v890, %v859
        %vm894 = vcmask 523264
        %v895 = vsel %vm894, %v892, %v863
        %v896 = vsel %vm894, %v893, %v865
        %vm897 = vcmask 654336
        %v898 = vsel %vm897, %v895, %v869
        %v899 = vsel %vm897, %v896, %v871
        %vm900 = vcmask 785408
        %v901 = vsel %vm900, %v898, %v875
        %v902 = vsel %vm900, %v899, %v877
        %vm903 = vcmask 916480
        %v904 = vsel %vm903, %v901, %v881
        %v905 = vsel %vm903, %v902, %v883
        %v906 = vlaneseq
        %v907 = vshrl.u32 %v906, 7
        %v908 = vsub.s32 0, %v907
        %v909 = vrot.slane %v391, %v908
        %v910 = vmul.f32 %v909, %v904
        %v911 = vmul.f32 %v909, %v905
        %v912 = vadd.f32 %v910, 0.0
        %v913 = vadd.f32 %v911, 0.0
        %v914 = vadd.f32 %v457, %v834
        %v915 = vadd.f32 %v458, %v837
        %918 = vrot.lane.b32.xlu0 %v914, 16
        %v919 = vpop.permute.xlu0 %918
        %920 = vrot.lane.b32.xlu0 %v915, 16
        %v921 = vpop.permute.xlu0 %920
        %924 = vrot.lane.b32.xlu0 %v914, 32
        %v925 = vpop.permute.xlu0 %924
        %926 = vrot.lane.b32.xlu0 %v915, 32
        %v927 = vpop.permute.xlu0 %926
        %930 = vrot.lane.b32.xlu0 %v914, 48
        %v931 = vpop.permute.xlu0 %930
        %932 = vrot.lane.b32.xlu0 %v915, 48
        %v933 = vpop.permute.xlu0 %932
        %936 = vrot.lane.b32.xlu0 %v914, 64
        %v937 = vpop.permute.xlu0 %936
        %938 = vrot.lane.b32.xlu0 %v915, 64
        %v939 = vpop.permute.xlu0 %938
        %942 = vrot.lane.b32.xlu0 %v914, 80
        %v943 = vpop.permute.xlu0 %942
        %944 = vrot.lane.b32.xlu0 %v915, 80
        %v945 = vpop.permute.xlu0 %944
        %948 = vrot.lane.b32.xlu0 %v914, 96
        %v949 = vpop.permute.xlu0 %948
        %950 = vrot.lane.b32.xlu0 %v915, 96
        %v951 = vpop.permute.xlu0 %950
        %954 = vrot.lane.b32.xlu0 %v914, 112
        %v955 = vpop.permute.xlu0 %954
        %956 = vrot.lane.b32.xlu0 %v915, 112
        %v957 = vpop.permute.xlu0 %956
        %v960 = vsel %vm525, %v914, %v919
        %v961 = vsel %vm525, %v915, %v921
        %v962 = vsel %vm888, %v960, %v925
        %v963 = vsel %vm888, %v961, %v927
        %v964 = vsel %vm891, %v962, %v931
        %v965 = vsel %vm891, %v963, %v933
        %v966 = vsel %vm894, %v964, %v937
        %v967 = vsel %vm894, %v965, %v939
        %v968 = vsel %vm897, %v966, %v943
        %v969 = vsel %vm897, %v967, %v945
        %v970 = vsel %vm900, %v968, %v949
        %v971 = vsel %vm900, %v969, %v951
        %v972 = vsel %vm903, %v970, %v955
        %v973 = vsel %vm903, %v971, %v957
        %v974 = vlaneseq
        %v975 = vshrl.u32 %v974, 7
        %v976 = vsub.s32 1, %v975
        %v977 = vrot.slane %v391, %v976
        %v978 = vmul.f32 %v977, %v972
        %v979 = vmul.f32 %v977, %v973
        %v980 = vadd.f32 %v912, %v978
        %v981 = vadd.f32 %v913, %v979
        %984 = vrot.lane.b32.xlu0 %v513, 16
        %v985 = vpop.permute.xlu0 %984
        %986 = vrot.lane.b32.xlu0 %v514, 16
        %v987 = vpop.permute.xlu0 %986
        %v990 = vsel %vm525, %v485, %v985
        %v991 = vsel %vm525, %v486, %v987
        %v992 = vld [vmem:[%s7] sm:$0xf]
        %v993 = vld [vmem:[%s7 + $0x4] sm:$0xf]
        %v994 = vld [vmem:[%s7 + $0x8] sm:$0x1]
        %v995 = vpack.c.bf16 %v991, %v990
        %v999 = vunpack.c.l.b16 %v992
        %v1000 = vunpack.c.l.b16 %v993
        %v1001 = vunpack.c.l.b16 %v994
        %v1002 = vpack.c.b16 %v1000, %v999
        %v1003 = vpack.c.b16 %v1001, %v1001
        %v1005 = vsel %vm525, %v1002, 0
        %v1008 = vsel %vm525, %v1003, 0
        %1010 = vmatprep.subr.bf16.mxu0 0
        %1011 = vmatpush1.bf16.msra.mxu0 %v995
        %1012 = vmatprep.subr.bf16.mxu0 0
        %1013 = vmatpush1.bf16.msra.mxu0 0
        %1014 = vmatprep.subr.bf16.mxu0 0
        %1015 = vmatpush1.bf16.msra.mxu0 0
        %1016 = vmatprep.subr.bf16.mxu0 0
        %1017 = vmatpush1.bf16.msra.mxu0 0
        %1018 = vmatprep.subr.bf16.mxu0 0
        %1019 = vmatpush1.bf16.msra.mxu0 0
        %1020 = vmatprep.subr.bf16.mxu0 0
        %1021 = vmatpush1.bf16.msra.mxu0 0
        %1022 = vmatprep.subr.bf16.mxu0 0
        %1023 = vmatpush1.bf16.msra.mxu0 0
        %1024 = vmatprep.subr.bf16.mxu0 0
        %1025 = vmatpush1.bf16.msra.mxu0 0
        %1026 = vmatprep.subr.bf16.mxu0 0
        %1027 = vmatpush1.bf16.msra.mxu0 0
        %1028 = vmatprep.subr.bf16.mxu0 0
        %1029 = vmatpush1.bf16.msra.mxu0 0
        %1030 = vmatprep.subr.bf16.mxu0 0
        %1031 = vmatpush1.bf16.msra.mxu0 0
        %1032 = vmatprep.subr.bf16.mxu0 0
        %1033 = vmatpush1.bf16.msra.mxu0 0
        %1034 = vmatprep.subr.bf16.mxu0 0
        %1035 = vmatpush1.bf16.msra.mxu0 0
        %1036 = vmatprep.subr.bf16.mxu0 0
        %1037 = vmatpush1.bf16.msra.mxu0 0
        %1038 = vmatprep.subr.bf16.mxu0 0
        %1039 = vmatpush1.bf16.msra.mxu0 0
        %1040 = vmatprep.subr.bf16.mxu0 0
        %1041 = vmatpush1.bf16.msra.mxu0 0
        %1042 = vmatprep.mubr.bf16.mxu0 0
        %1043 = vmatmul.mubr.bf16.gmra.mrb[0].mxu0 %v1005
        %v1044 = vpop.f32.mrb[0].mxu0
        %v1045 = vadd.f32 0.0, %v1044
        %v1046 = vpop.f32.mrb[0].mxu0
        %v1047 = vpop.f32.mrb[0].mxu0
        %v1048 = vadd.f32 0.0, %v1047
        %v1049 = vpop.f32.mrb[0].mxu0
        %1050 = vmatprep.mubr.bf16.mxu0 0
        %1051 = vmatmul.mubr.bf16.gmra.mrb[0].mxu0 %v1008
        %v1052 = vpop.f32.mrb[0].mxu0
        %v1053 = vadd.f32 0.0, %v1052
        %v1054 = vpop.f32.mrb[0].mxu0
        %v1055 = vpop.f32.mrb[0].mxu0
        %v1056 = vpop.f32.mrb[0].mxu0
        %1057 = vdwg.mxu0
        %s1058 = sld [smem:[#allocation8]]
        %v1059 = vstv %s1058
        %v1060 = vmul.f32 %v1059, %v1045
        %v1061 = vmul.f32 %v1059, %v1048
        %s1062 = sld [smem:[#allocation8 + $0x100]]
        %v1063 = vstv %s1062
        %v1064 = vmul.f32 %v1063, %v1045
        %v1065 = vmul.f32 %v1063, %v1048
        %s1066 = sld [smem:[#allocation8 + $0x1]]
        %v1067 = vstv %s1066
        %v1068 = vmul.f32 %v1067, %v1045
        %v1069 = vmul.f32 %v1067, %v1048
        %1072 = vrot.lane.b32.xlu0 %v1068, 112
        %v1073 = vpop.permute.xlu0 %1072
        %1074 = vrot.lane.b32.xlu0 %v1069, 112
        %v1075 = vpop.permute.xlu0 %1074
        %v1078 = vadd.f32 %v1060, %v1073
        %v1079 = vadd.f32 %v1061, %v1075
        %s1080 = sld [smem:[#allocation8 + $0x101]]
        %v1081 = vstv %s1080
        %v1082 = vmul.f32 %v1081, %v1045
        %v1083 = vmul.f32 %v1081, %v1048
        %1086 = vrot.lane.b32.xlu0 %v1082, 112
        %v1087 = vpop.permute.xlu0 %1086
        %1088 = vrot.lane.b32.xlu0 %v1083, 112
        %v1089 = vpop.permute.xlu0 %1088
        %v1092 = vadd.f32 %v1064, %v1087
        %v1093 = vadd.f32 %v1065, %v1089
        %s1094 = sld [smem:[#allocation8 + $0x2]]
        %v1095 = vstv %s1094
        %v1096 = vmul.f32 %v1095, %v1048
        %v1097 = vmul.f32 %v1095, %v1053
        %vm1100 = vcmask 1046528
        %v1101 = vrot.slane %v1096, 1
        %v1102 = vrot.slane %v1097, 1
        %v1103 = vsel %vm1100, %v1101, %v1102
        %v1106 = vadd.f32 %v1078, %v1103
        %v1107 = vadd.f32 %v1079, %v1102
        %s1108 = sld [smem:[#allocation8 + $0x102]]
        %v1109 = vstv %s1108
        %v1110 = vmul.f32 %v1109, %v1048
        %v1111 = vmul.f32 %v1109, %v1053
        %v1114 = vrot.slane %v1110, 1
        %v1115 = vrot.slane %v1111, 1
        %v1116 = vsel %vm1100, %v1114, %v1115
        %v1119 = vadd.f32 %v1092, %v1116
        %v1120 = vadd.f32 %v1093, %v1115
        %s1121 = sld [smem:[#allocation8 + $0x3]]
        %v1122 = vstv %s1121
        %v1123 = vmul.f32 %v1122, %v1048
        %v1124 = vmul.f32 %v1122, %v1053
        %v1127 = vrot.slane %v1123, 1
        %v1128 = vrot.slane %v1124, 1
        %v1129 = vsel %vm1100, %v1127, %v1128
        %1130 = vrot.lane.b32.xlu0 %v1129, 112
        %v1131 = vpop.permute.xlu0 %1130
        %1132 = vrot.lane.b32.xlu0 %v1128, 112
        %v1133 = vpop.permute.xlu0 %1132
        %v1136 = vadd.f32 %v1106, %v1131
        %v1137 = vadd.f32 %v1107, %v1133
        %s1138 = sld [smem:[#allocation8 + $0x103]]
        %v1139 = vstv %s1138
        %v1140 = vmul.f32 %v1139, %v1048
        %v1141 = vmul.f32 %v1139, %v1053
        %v1144 = vrot.slane %v1140, 1
        %v1145 = vrot.slane %v1141, 1
        %v1146 = vsel %vm1100, %v1144, %v1145
        %1147 = vrot.lane.b32.xlu0 %v1146, 112
        %v1148 = vpop.permute.xlu0 %1147
        %1149 = vrot.lane.b32.xlu0 %v1145, 112
        %v1150 = vpop.permute.xlu0 %1149
        %v1153 = vadd.f32 %v1119, %v1148
        %v1154 = vadd.f32 %v1120, %v1150
        %s1155 = sld [smem:[#allocation8 + $0x80]]
        %v1156 = vstv %s1155
        %v1157 = vmul.f32 %v1156, %v1045
        %v1158 = vmul.f32 %v1156, %v1048
        %s1159 = sld [smem:[#allocation8 + $0x180]]
        %v1160 = vstv %s1159
        %v1161 = vmul.f32 %v1160, %v1045
        %v1162 = vmul.f32 %v1160, %v1048
        %s1163 = sld [smem:[#allocation8 + $0x81]]
        %v1164 = vstv %s1163
        %v1165 = vmul.f32 %v1164, %v1045
        %v1166 = vmul.f32 %v1164, %v1048
        %1169 = vrot.lane.b32.xlu0 %v1165, 112
        %v1170 = vpop.permute.xlu0 %1169
        %1171 = vrot.lane.b32.xlu0 %v1166, 112
        %v1172 = vpop.permute.xlu0 %1171
        %v1175 = vadd.f32 %v1157, %v1170
        %v1176 = vadd.f32 %v1158, %v1172
        %s1177 = sld [smem:[#allocation8 + $0x181]]
        %v1178 = vstv %s1177
        %v1179 = vmul.f32 %v1178, %v1045
        %v1180 = vmul.f32 %v1178, %v1048
        %1183 = vrot.lane.b32.xlu0 %v1179, 112
        %v1184 = vpop.permute.xlu0 %1183
        %1185 = vrot.lane.b32.xlu0 %v1180, 112
        %v1186 = vpop.permute.xlu0 %1185
        %v1189 = vadd.f32 %v1161, %v1184
        %v1190 = vadd.f32 %v1162, %v1186
        %s1191 = sld [smem:[#allocation8 + $0x82]]
        %v1192 = vstv %s1191
        %v1193 = vmul.f32 %v1192, %v1048
        %v1194 = vmul.f32 %v1192, %v1053
        %v1197 = vrot.slane %v1193, 1
        %v1198 = vrot.slane %v1194, 1
        %v1199 = vsel %vm1100, %v1197, %v1198
        %v1202 = vadd.f32 %v1175, %v1199
        %v1203 = vadd.f32 %v1176, %v1198
        %s1204 = sld [smem:[#allocation8 + $0x182]]
        %v1205 = vstv %s1204
        %v1206 = vmul.f32 %v1205, %v1048
        %v1207 = vmul.f32 %v1205, %v1053
        %v1210 = vrot.slane %v1206, 1
        %v1211 = vrot.slane %v1207, 1
        %v1212 = vsel %vm1100, %v1210, %v1211
        %v1215 = vadd.f32 %v1189, %v1212
        %v1216 = vadd.f32 %v1190, %v1211
        %s1217 = sld [smem:[#allocation8 + $0x83]]
        %v1218 = vstv %s1217
        %v1219 = vmul.f32 %v1218, %v1048
        %v1220 = vmul.f32 %v1218, %v1053
        %v1223 = vrot.slane %v1219, 1
        %v1224 = vrot.slane %v1220, 1
        %v1225 = vsel %vm1100, %v1223, %v1224
        %1226 = vrot.lane.b32.xlu0 %v1225, 112
        %v1227 = vpop.permute.xlu0 %1226
        %1228 = vrot.lane.b32.xlu0 %v1224, 112
        %v1229 = vpop.permute.xlu0 %1228
        %v1232 = vadd.f32 %v1202, %v1227
        %v1233 = vadd.f32 %v1203, %v1229
        %s1234 = sld [smem:[#allocation8 + $0x183]]
        %v1235 = vstv %s1234
        %v1236 = vmul.f32 %v1235, %v1048
        %v1237 = vmul.f32 %v1235, %v1053
        %v1240 = vrot.slane %v1236, 1
        %v1241 = vrot.slane %v1237, 1
        %v1242 = vsel %vm1100, %v1240, %v1241
        %1243 = vrot.lane.b32.xlu0 %v1242, 112
        %v1244 = vpop.permute.xlu0 %1243
        %1245 = vrot.lane.b32.xlu0 %v1241, 112
        %v1246 = vpop.permute.xlu0 %1245
        %v1249 = vadd.f32 %v1215, %v1244
        %v1250 = vadd.f32 %v1216, %v1246
        %1253 = vrot.lane.b32.xlu0 %v1232, 16
        %v1254 = vpop.permute.xlu0 %1253
        %1255 = vrot.lane.b32.xlu0 %v1233, 16
        %v1256 = vpop.permute.xlu0 %1255
        %v1259 = vsel %vm525, %v1136, %v1254
        %v1260 = vsel %vm525, %v1137, %v1256
        %1263 = vrot.lane.b32.xlu0 %v1249, 16
        %v1264 = vpop.permute.xlu0 %1263
        %1265 = vrot.lane.b32.xlu0 %v1250, 16
        %v1266 = vpop.permute.xlu0 %1265
        %v1269 = vsel %vm525, %v1153, %v1264
        %v1270 = vsel %vm525, %v1154, %v1266
        %v1273 = vrot.slane %v1269, 7
        %v1274 = vrot.slane %v1270, 7
        %v1275 = vsel %vm787, %v1273, %v1274
        %v1278 = vsel %vm787, %v1260, %v1273
        %vm1279 = vcmp.ge.f32.partialorder %v1259, 0.0
        %vm1280 = vcmp.ge.f32.partialorder %v1278, 0.0
        %vm1281 = vcmp.ge.f32.partialorder %v1275, 0.0
        %v1282 = vmul.f32 %v1259, 0.05
        %v1283 = vmul.f32 %v1278, 0.05
        %v1284 = vmul.f32 %v1275, 0.05
        %v1285 = vsel %vm1279, %v1259, %v1282
        %v1286 = vsel %vm1280, %v1278, %v1283
        %v1287 = vsel %vm1281, %v1275, %v1284
        %v1288 = vld [vmem:[%s8] sm:$0xf]
        %v1289 = vld [vmem:[%s8 + $0x4] sm:$0xf]
        %v1290 = vpack.c.bf16 %v1286, %v1285
        %v1291 = vpack.c.bf16 %v1287, %v1287
        %v1294 = vunpack.c.l.b16 %v1288
        %v1295 = vunpack.c.l.b16 %v1289
        %v1296 = vpack.c.b16 %v1295, %v1294
        %v1298 = vsel %vm780, %v1296, 0
        %v1301 = vsel %vm787, %v1291, 0
        %1303 = vmatprep.subr.bf16.mxu0 0
        %1304 = vmatpush1.bf16.msra.mxu0 %v1290
        %1305 = vmatprep.subr.bf16.mxu0 0
        %1306 = vmatpush1.bf16.msra.mxu0 %v1301
        %1307 = vmatprep.subr.bf16.mxu0 0
        %1308 = vmatpush1.bf16.msra.mxu0 0
        %1309 = vmatprep.subr.bf16.mxu0 0
        %1310 = vmatpush1.bf16.msra.mxu0 0
        %1311 = vmatprep.subr.bf16.mxu0 0
        %1312 = vmatpush1.bf16.msra.mxu0 0
        %1313 = vmatprep.subr.bf16.mxu0 0
        %1314 = vmatpush1.bf16.msra.mxu0 0
        %1315 = vmatprep.subr.bf16.mxu0 0
        %1316 = vmatpush1.bf16.msra.mxu0 0
        %1317 = vmatprep.subr.bf16.mxu0 0
        %1318 = vmatpush1.bf16.msra.mxu0 0
        %1319 = vmatprep.subr.bf16.mxu0 0
        %1320 = vmatpush1.bf16.msra.mxu0 0
        %1321 = vmatprep.subr.bf16.mxu0 0
        %1322 = vmatpush1.bf16.msra.mxu0 0
        %1323 = vmatprep.subr.bf16.mxu0 0
        %1324 = vmatpush1.bf16.msra.mxu0 0
        %1325 = vmatprep.subr.bf16.mxu0 0
        %1326 = vmatpush1.bf16.msra.mxu0 0
        %1327 = vmatprep.subr.bf16.mxu0 0
        %1328 = vmatpush1.bf16.msra.mxu0 0
        %1329 = vmatprep.subr.bf16.mxu0 0
        %1330 = vmatpush1.bf16.msra.mxu0 0
        %1331 = vmatprep.subr.bf16.mxu0 0
        %1332 = vmatpush1.bf16.msra.mxu0 0
        %1333 = vmatprep.subr.bf16.mxu0 0
        %1334 = vmatpush1.bf16.msra.mxu0 0
        %1335 = vmatprep.mubr.bf16.mxu0 0
        %1336 = vmatmul.mubr.bf16.gmra.mrb[0].mxu0 %v1298
        %v1337 = vpop.f32.mrb[0].mxu0
        %v1338 = vadd.f32 0.0, %v1337
        %v1339 = vpop.f32.mrb[0].mxu0
        %v1340 = vpop.f32.mrb[0].mxu0
        %v1341 = vadd.f32 0.0, %v1340
        %v1342 = vpop.f32.mrb[0].mxu0
        %1343 = vdwg.mxu0
        %v1344 = vadd.f32 %v485, %v1338
        %v1345 = vadd.f32 %v486, %v1341
        %1348 = vrot.lane.b32.xlu0 %v1344, 16
        %v1349 = vpop.permute.xlu0 %1348
        %1350 = vrot.lane.b32.xlu0 %v1345, 16
        %v1351 = vpop.permute.xlu0 %1350
        %1354 = vrot.lane.b32.xlu0 %v1344, 32
        %v1355 = vpop.permute.xlu0 %1354
        %1356 = vrot.lane.b32.xlu0 %v1345, 32
        %v1357 = vpop.permute.xlu0 %1356
        %1360 = vrot.lane.b32.xlu0 %v1344, 48
        %v1361 = vpop.permute.xlu0 %1360
        %1362 = vrot.lane.b32.xlu0 %v1345, 48
        %v1363 = vpop.permute.xlu0 %1362
        %1366 = vrot.lane.b32.xlu0 %v1344, 64
        %v1367 = vpop.permute.xlu0 %1366
        %1368 = vrot.lane.b32.xlu0 %v1345, 64
        %v1369 = vpop.permute.xlu0 %1368
        %1372 = vrot.lane.b32.xlu0 %v1344, 80
        %v1373 = vpop.permute.xlu0 %1372
        %1374 = vrot.lane.b32.xlu0 %v1345, 80
        %v1375 = vpop.permute.xlu0 %1374
        %1378 = vrot.lane.b32.xlu0 %v1344, 96
        %v1379 = vpop.permute.xlu0 %1378
        %1380 = vrot.lane.b32.xlu0 %v1345, 96
        %v1381 = vpop.permute.xlu0 %1380
        %1384 = vrot.lane.b32.xlu0 %v1344, 112
        %v1385 = vpop.permute.xlu0 %1384
        %1386 = vrot.lane.b32.xlu0 %v1345, 112
        %v1387 = vpop.permute.xlu0 %1386
        %v1390 = vsel %vm525, %v1344, %v1349
        %v1391 = vsel %vm525, %v1345, %v1351
        %v1392 = vsel %vm888, %v1390, %v1355
        %v1393 = vsel %vm888, %v1391, %v1357
        %v1394 = vsel %vm891, %v1392, %v1361
        %v1395 = vsel %vm891, %v1393, %v1363
        %v1396 = vsel %vm894, %v1394, %v1367
        %v1397 = vsel %vm894, %v1395, %v1369
        %v1398 = vsel %vm897, %v1396, %v1373
        %v1399 = vsel %vm897, %v1397, %v1375
        %v1400 = vsel %vm900, %v1398, %v1379
        %v1401 = vsel %vm900, %v1399, %v1381
        %v1402 = vsel %vm903, %v1400, %v1385
        %v1403 = vsel %vm903, %v1401, %v1387
        %v1404 = vlaneseq
        %v1405 = vshrl.u32 %v1404, 7
        %v1406 = vsub.s32 2, %v1405
        %v1407 = vrot.slane %v391, %v1406
        %v1408 = vmul.f32 %v1407, %v1402
        %v1409 = vmul.f32 %v1407, %v1403
        %v1410 = vadd.f32 %v980, %v1408
        %v1411 = vadd.f32 %v981, %v1409
        %1414 = vrot.lane.b32.xlu0 %v1338, 112
        %v1415 = vpop.permute.xlu0 %1414
        %1416 = vrot.lane.b32.xlu0 %v1341, 112
        %v1417 = vpop.permute.xlu0 %1416
        %v1420 = vadd.f32 %v513, %v1415
        %v1421 = vadd.f32 %v514, %v1417
        %1424 = vrot.lane.b32.xlu0 %v1420, 16
        %v1425 = vpop.permute.xlu0 %1424
        %1426 = vrot.lane.b32.xlu0 %v1421, 16
        %v1427 = vpop.permute.xlu0 %1426
        %1430 = vrot.lane.b32.xlu0 %v1420, 32
        %v1431 = vpop.permute.xlu0 %1430
        %1432 = vrot.lane.b32.xlu0 %v1421, 32
        %v1433 = vpop.permute.xlu0 %1432
        %1436 = vrot.lane.b32.xlu0 %v1420, 48
        %v1437 = vpop.permute.xlu0 %1436
        %1438 = vrot.lane.b32.xlu0 %v1421, 48
        %v1439 = vpop.permute.xlu0 %1438
        %1442 = vrot.lane.b32.xlu0 %v1420, 64
        %v1443 = vpop.permute.xlu0 %1442
        %1444 = vrot.lane.b32.xlu0 %v1421, 64
        %v1445 = vpop.permute.xlu0 %1444
        %1448 = vrot.lane.b32.xlu0 %v1420, 80
        %v1449 = vpop.permute.xlu0 %1448
        %1450 = vrot.lane.b32.xlu0 %v1421, 80
        %v1451 = vpop.permute.xlu0 %1450
        %1454 = vrot.lane.b32.xlu0 %v1420, 96
        %v1455 = vpop.permute.xlu0 %1454
        %1456 = vrot.lane.b32.xlu0 %v1421, 96
        %v1457 = vpop.permute.xlu0 %1456
        %1460 = vrot.lane.b32.xlu0 %v1420, 112
        %v1461 = vpop.permute.xlu0 %1460
        %1462 = vrot.lane.b32.xlu0 %v1421, 112
        %v1463 = vpop.permute.xlu0 %1462
        %v1466 = vsel %vm525, %v1420, %v1425
        %v1467 = vsel %vm525, %v1421, %v1427
        %v1468 = vsel %vm888, %v1466, %v1431
        %v1469 = vsel %vm888, %v1467, %v1433
        %v1470 = vsel %vm891, %v1468, %v1437
        %v1471 = vsel %vm891, %v1469, %v1439
        %v1472 = vsel %vm894, %v1470, %v1443
        %v1473 = vsel %vm894, %v1471, %v1445
        %v1474 = vsel %vm897, %v1472, %v1449
        %v1475 = vsel %vm897, %v1473, %v1451
        %v1476 = vsel %vm900, %v1474, %v1455
        %v1477 = vsel %vm900, %v1475, %v1457
        %v1478 = vsel %vm903, %v1476, %v1461
        %v1479 = vsel %vm903, %v1477, %v1463
        %v1480 = vlaneseq
        %v1481 = vshrl.u32 %v1480, 7
        %v1482 = vsub.s32 3, %v1481
        %v1483 = vrot.slane %v391, %v1482
        %v1484 = vmul.f32 %v1483, %v1478
        %v1485 = vmul.f32 %v1483, %v1479
        %v1486 = vadd.f32 %v1410, %v1484
        %v1487 = vadd.f32 %v1411, %v1485
        %1488 = vst [vmem:[%s389] sm:$0xff] %v1486
        %1489 = vst [vmem:[%s389 + $0x8] sm:$0xff] %v1487
        %s1490 = sand.u32 %s230, 1
        %s1491 = scalar_lea.sflag [#allocation4], %s1490
        %s1492 = sand.u32 %s230, 1
        %s1493 = smul.addr %s1492, 16
        %s1494 = scalar_lea.vmem [#allocation10], %s1493
        // Predicated region
        $region73: #{tpu_custom_call.1} parent=55 // pred_check
          %p1495 = pneg %p240
        $region74: #{tpu_custom_call.1} parent=55 // pred_check_branch
          %1497 = sbr.rel (%p1495) target = $region76
        $region75: #{tpu_custom_call.1} parent=55 // pred_region
          %s1499 = ssub.s32 256, 256
          %1500 = vsyncadd %s1491, %s1499
          %s1501 = smul.addr %s28, 2
          %s1502 = smul.addr %s1501, 128
          %s1503 = scalar_lea.hbm %s9, %s1502
          %s1504 = sshll.u32 %s1494, 4
          %s1505 = int_to_ptr.vmem [resolvable:$true] %s1504
          %1510 = dma.vmem_to_hbm [thread:$0]  %s1505, 256, %s1503, %s1491, 128, 128, 8
        $region76: #{tpu_custom_call.1} parent=55 // pred_fallthru
          _
      $region56: #{tpu_custom_call.1} parent=5 // pred_fallthru
        _
      %p1511 = scmp.le.s32.totalorder 2, %s23
      // Predicated region
      $region77: #{tpu_custom_call.1} parent=5 // pred_check
        %p1512 = pneg %p1511
      $region78: #{tpu_custom_call.1} parent=5 // pred_check_branch
        %1514 = sbr.rel (%p1512) target = $region80
      $region79: #{tpu_custom_call.1} parent=5 // pred_region
        %s1515 = ssub.s32 %s23, 2
        // Predicated region
        $region81: #{tpu_custom_call.1} parent=79 // pred_check
          %p1516 = pneg %p246
        $region82: #{tpu_custom_call.1} parent=79 // pred_check_branch
          %1518 = sbr.rel (%p1516) target = $region84
        $region83: #{tpu_custom_call.1} parent=79 // pred_region
          %s1519 = sand.u32 %s231, 1
          %s1520 = scalar_lea.sflag [#allocation4], %s1519
          %s1521 = sand.u32 %s231, 1
          %s1522 = smul.addr %s1521, 16
          %s1523 = scalar_lea.vmem [#allocation10], %s1522
          %1524 = dma.done %s1520, 256
        $region84: #{tpu_custom_call.1} parent=79 // pred_fallthru
          _
      $region80: #{tpu_custom_call.1} parent=5 // pred_fallthru
        _
    $region6: #{tpu_custom_call.1} parent=1 // loop_footer
      %s27 = sadd.s32 1, %s23
    $region7: #{tpu_custom_call.1} parent=1 // loop_footer_branch
      %22 = sbr.rel target = $region3
    $region8: #{tpu_custom_call.1} parent=1 // loop_exit
      _
    %1525 = vsyncpa [#allocation3], 1
    %s1526 = scalar_lea.sflag [#allocation3], 1
    %1527 = vsyncpa %s1526, 1
    %1528 = vsyncpa [#allocation4], 1
    %s1529 = scalar_lea.sflag [#allocation4], 1
    %1530 = vsyncpa %s1529, 1
    %1531 = vsyncpa [#allocation5], 1
    %s1532 = scalar_lea.sflag [#allocation5], 1
    %1533 = vsyncpa %s1532, 1
    %1534 = vsyncpa [#allocation7], 1

</llo_original>
